<compile_context>
chip_gen: v7x
topology: tpu7x:2x2x1
jax: 0.10.0
libtpu: 0.0.40
codegen_flags: <defaults>
</compile_context>

<pallas_src>
import functools

import jax
import jax.numpy as jnp
from jax import lax
from jax.experimental import pallas as pl
from jax.experimental.pallas import tpu as pltpu

LANE = 128
SUB = 8


def _round_up(x, m):
    return ((x + m - 1) // m) * m


def _next_pow2(x):
    return 1 if x <= 1 else 1 << (x - 1).bit_length()


# --------------------------------------------------------------------------
# Fused kernel: one grid step per GRU segment (encoders, dummies, decoder
# last).  Weights/inputs are VMEM-resident; scalar-prefetched per-segment
# (length, weight-slot) arrays select the right slices; the hidden state is
# carried across steps in VMEM scratch.
# --------------------------------------------------------------------------
def dmnc_kernel(len_ref, fld_ref, nval_ref,                   # scalar prefetch
                x_ref, wih_ref, whh_ref, bih_ref, bhh_ref,    # resident inputs
                ow_ref, ob_ref,
                logits_ref,                                   # output
                h_scr, state_scr, gi_scr, seq_scr,            # VMEM scratch
                *, K):
    s = pl.program_id(0)
    is_dec = s == pl.num_programs(0) - 1
    Ep = h_scr.shape[-1]

    @pl.when(s == 0)
    def _init():
        h_scr[...] = jnp.zeros_like(h_scr)
        state_scr[...] = jnp.zeros_like(state_scr)
        seq_scr[...] = jnp.zeros_like(seq_scr)

    # Decoder initial hidden = mean of the per-field final encoder hiddens.
    # Only rows 0..K-1 can hold encoder state; denominator = #fields actually
    # encoded (same as the verified reference semantics), via SMEM.
    @pl.when(is_dec)
    def _dec_init():
        row_ids = lax.broadcasted_iota(jnp.int32, state_scr.shape, 0)
        summed = jnp.sum(jnp.where(row_ids < K, state_scr[...], 0.0),
                         axis=0, keepdims=True)
        inv = (1.0 / jnp.maximum(nval_ref[0], 1)).astype(jnp.float32)
        h_scr[...] = summed * inv

    w = fld_ref[s]         # weight/state slot for this segment (K = decoder)
    seg_len = len_ref[s]   # true length; 0 for dummy segments

    # Hoisted input->gates matmul for the whole (padded) segment: one MXU call
    # instead of one tiny matmul per recurrence step.
    gi_scr[...] = (
        jnp.dot(x_ref[s], wih_ref[w], preferred_element_type=jnp.float32)
        + bih_ref[w]
    )

    def gru_step(t, h):
        gi = gi_scr[pl.ds(t, 1), :]                               # [1, 3*Ep]
        gh = (jnp.dot(h, whh_ref[w], preferred_element_type=jnp.float32)
              + bhh_ref[w])
        r = jax.nn.sigmoid(gi[:, 0:Ep] + gh[:, 0:Ep])
        z = jax.nn.sigmoid(gi[:, Ep:2 * Ep] + gh[:, Ep:2 * Ep])
        n = jnp.tanh(gi[:, 2 * Ep:3 * Ep] + r * gh[:, 2 * Ep:3 * Ep])
        return (1.0 - z) * n + z * h

    # Encoder / dummy segments: no per-step hidden sequence needed.
    @pl.when(jnp.logical_not(is_dec))
    def _run_encoder():
        h_scr[...] = lax.fori_loop(0, seg_len, gru_step, h_scr[...])

    # Decoder: also record every step's hidden for the fused projection.
    @pl.when(is_dec)
    def _run_decoder():
        def dec_step(t, h):
            h_new = gru_step(t, h)
            seq_scr[pl.ds(t, 1), :] = h_new
            return h_new
        h_scr[...] = lax.fori_loop(0, seg_len, dec_step, h_scr[...])

    # Record this segment's final hidden under its slot row.  Dummy segments
    # and the decoder write row K, which the decoder-init mean never reads.
    row_ids = lax.broadcasted_iota(jnp.int32, (state_scr.shape[0], 1), 0)
    state_scr[...] = jnp.where(row_ids == w, h_scr[...], state_scr[...])

    # Fused output projection on the VMEM-resident decoder hidden sequence.
    # Rows >= seg_len of seq_scr are zero (init), so padded logits = bias and
    # are sliced off in the wrapper.
    @pl.when(is_dec)
    def _project():
        logits_ref[...] = (
            jnp.dot(seq_scr[...], ow_ref[...],
                    preferred_element_type=jnp.float32) + ob_ref[...]
        )


# --------------------------------------------------------------------------
# Parameter init (deterministic) and packing into the lane-padded, stacked
# kernel layout.
# --------------------------------------------------------------------------
def init_gru_params(key, emb_dim):
    k1, k2, k3, k4 = jax.random.split(key, 4)
    bound = 1.0 / jnp.sqrt(emb_dim)
    wih = jax.random.uniform(k1, (emb_dim, 3 * emb_dim), jnp.float32, -bound, bound)
    whh = jax.random.uniform(k2, (emb_dim, 3 * emb_dim), jnp.float32, -bound, bound)
    bih = jax.random.uniform(k3, (1, 3 * emb_dim), jnp.float32, -bound, bound)
    bhh = jax.random.uniform(k4, (1, 3 * emb_dim), jnp.float32, -bound, bound)
    return (wih, whh, bih, bhh)


def _pack_gru(gru, emb_dim, Ep):
    """Repack [E,3E] / [1,3E] (gates r,z,n) into zero-padded [Ep,3Ep] / [1,3Ep]
    with each gate occupying its own 128-lane group (whole-vreg slices)."""
    wih, whh, bih, bhh = gru

    def pack_w(w):
        out = jnp.zeros((Ep, 3 * Ep), jnp.float32)
        for g in range(3):
            out = out.at[:emb_dim, g * Ep:g * Ep + emb_dim].set(
                w[:, g * emb_dim:(g + 1) * emb_dim])
        return out

    def pack_b(b):
        out = jnp.zeros((1, 3 * Ep), jnp.float32)
        for g in range(3):
            out = out.at[:, g * Ep:g * Ep + emb_dim].set(
                b[:, g * emb_dim:(g + 1) * emb_dim])
        return out

    return pack_w(wih), pack_w(whh), pack_b(bih), pack_b(bhh)


def init_params(key, vocab_size, emb_dim):
    K = len(vocab_size)
    token_start = vocab_size[K - 1]
    output_size = token_start + 2
    Ep = _round_up(emb_dim, LANE)
    Op = _round_up(output_size, LANE)
    keys = jax.random.split(key, 2 * K + 3)

    embeddings = []
    for j in range(K):
        n_rows = vocab_size[j] if j != K - 1 else output_size
        e = jax.random.uniform(keys[j], (n_rows, emb_dim), jnp.float32, -0.1, 0.1)
        embeddings.append(jnp.pad(e, ((0, 0), (0, Ep - emb_dim))))

    grus = [init_gru_params(keys[K + j], emb_dim) for j in range(K)]   # encoders
    grus.append(init_gru_params(keys[2 * K], emb_dim))                 # decoder
    packed = [_pack_gru(g, emb_dim, Ep) for g in grus]
    wih_all = jnp.stack([p[0] for p in packed])    # [K+1, Ep, 3*Ep]
    whh_all = jnp.stack([p[1] for p in packed])
    bih_all = jnp.stack([p[2] for p in packed])    # [K+1, 1, 3*Ep]
    bhh_all = jnp.stack([p[3] for p in packed])

    bound = 1.0 / jnp.sqrt(emb_dim)
    out_w = jax.random.uniform(keys[2 * K + 1], (emb_dim, output_size),
                               jnp.float32, -bound, bound)
    out_b = jax.random.uniform(keys[2 * K + 2], (1, output_size),
                               jnp.float32, -bound, bound)
    out_w = jnp.pad(out_w, ((0, Ep - emb_dim), (0, Op - output_size)))
    out_b = jnp.pad(out_b, ((0, 0), (0, Op - output_size)))

    return {
        "K": K, "emb_dim": emb_dim, "Ep": Ep, "Op": Op,
        "vocab_size": vocab_size,
        "token_start": token_start, "token_end": token_start + 1,
        "output_size": output_size,
        "embeddings": embeddings,
        "wih_all": wih_all, "whh_all": whh_all,
        "bih_all": bih_all, "bhh_all": bhh_all,
        "out_w": out_w, "out_b": out_b,
    }


# --------------------------------------------------------------------------
# Training-mode forward
# --------------------------------------------------------------------------
def dmnc_forward(params, input_visits):
    """input_visits: list of visits; each visit is a list of K python lists of
    code indices.  Returns (logits, target) like the training-mode forward."""
    K = params["K"]
    Ep, Op = params["Ep"], params["Op"]
    emb = params["embeddings"]
    n_visits = len(input_visits)
    decoder_point = n_visits - 1

    # Encoder segments in the exact (visit, field) order of the reference loop;
    # the hidden state threads sequentially through them.
    seg_fields, seg_codes = [], []
    for i in range(n_visits):
        for j in range(K):
            if i == decoder_point and j == K - 1:
                break
            seg_fields.append(j)
            seg_codes.append(list(input_visits[i][j]))

    n_valid = len(set(seg_fields))          # fields whose state row was written

    dec_codes = [params["token_start"]] + list(input_visits[-1][-1])
    t_dec = len(dec_codes)

    # Bucket segment count / padded length to powers of two so variable-length
    # records reuse the same compiled kernel.  Dummy segments (length 0, slot K)
    # sit between the encoders and the decoder and are exact no-ops.
    n_real = len(seg_codes) + 1
    n_seg = max(_next_pow2(n_real), 2)
    n_dummy = n_seg - n_real
    l_max = max(SUB, _next_pow2(max([len(c) for c in seg_codes] + [t_dec])))

    all_codes = seg_codes + [[] for _ in range(n_dummy)] + [dec_codes]
    weight_idx = seg_fields + [K] * n_dummy + [K]      # slot K = decoder GRU
    emb_idx = seg_fields + [K - 1] * n_dummy + [K - 1]
    lens = [len(c) for c in all_codes]

    # Embedding gathers (glue) + padding into a fixed [n_seg, l_max, Ep] slab.
    # Padded rows reuse embedding row 0; they are never touched by the dynamic
    # seg_len recurrence loop.
    rows = []
    for codes, ej in zip(all_codes, emb_idx):
        idx = jnp.zeros((l_max,), jnp.int32)
        if codes:
            idx = idx.at[:len(codes)].set(jnp.asarray(codes, jnp.int32))
        rows.append(jnp.take(emb[ej], idx, axis=0))
    x_all = jnp.stack(rows, axis=0)

    seg_len = jnp.asarray(lens, jnp.int32)
    seg_fld = jnp.asarray(weight_idx, jnp.int32)
    nval = jnp.asarray([n_valid], jnp.int32)
    state_rows = _round_up(K + 1, SUB)

    kernel = functools.partial(dmnc_kernel, K=K)
    logits_pad = pl.pallas_call(
        kernel,
        out_shape=jax.ShapeDtypeStruct((l_max, Op), jnp.float32),
        grid_spec=pltpu.PrefetchScalarGridSpec(
            num_scalar_prefetch=3,
            grid=(n_seg,),
            in_specs=[
                # Everything VMEM-resident across the whole grid (constant
                # index_maps) -> no per-segment weight / x re-DMA.
                pl.BlockSpec((n_seg, l_max, Ep), lambda s, ln, fl, nv: (0, 0, 0)),
                pl.BlockSpec((K + 1, Ep, 3 * Ep), lambda s, ln, fl, nv: (0, 0, 0)),
                pl.BlockSpec((K + 1, Ep, 3 * Ep), lambda s, ln, fl, nv: (0, 0, 0)),
                pl.BlockSpec((K + 1, 1, 3 * Ep), lambda s, ln, fl, nv: (0, 0, 0)),
                pl.BlockSpec((K + 1, 1, 3 * Ep), lambda s, ln, fl, nv: (0, 0, 0)),
                pl.BlockSpec((Ep, Op), lambda s, ln, fl, nv: (0, 0)),
                pl.BlockSpec((1, Op), lambda s, ln, fl, nv: (0, 0)),
            ],
            out_specs=pl.BlockSpec((l_max, Op), lambda s, ln, fl, nv: (0, 0)),
            scratch_shapes=[
                pltpu.VMEM((1, Ep), jnp.float32),            # hidden carry
                pltpu.VMEM((state_rows, Ep), jnp.float32),   # per-field finals
                pltpu.VMEM((l_max, 3 * Ep), jnp.float32),    # hoisted in-gates
                pltpu.VMEM((l_max, Ep), jnp.float32),        # decoder hidden seq
            ],
        ),
        compiler_params=pltpu.CompilerParams(
            dimension_semantics=("arbitrary",)),
    )(seg_len, seg_fld, nval, x_all, params["wih_all"], params["whh_all"],
      params["bih_all"], params["bhh_all"], params["out_w"], params["out_b"])

    logits = logits_pad[:t_dec, :params["output_size"]]
    target = jnp.asarray(list(input_visits[-1][-1]) + [params["token_end"]],
                         jnp.int32)
    return logits, target
    # TODO(synk): eval-mode greedy decoding (argmax feedback with a
    # data-dependent stop on token_end) is host-driven in the reference and is
    # not implemented as a Pallas kernel here.


# --------------------------------------------------------------------------
if __name__ == "__main__":
    key = jax.random.PRNGKey(0)
    vocab_size = (10, 12, 14)   # K = 3; last vocab -> output_size = 16
    emb_dim = 32

    params = init_params(key, vocab_size, emb_dim)

    # 2 visits, each visit has K=3 code lists (variable lengths, like the
    # PyTorch module's list-of-lists `input`).
    input_visits = [
        [[1, 3, 5], [0, 2, 4, 6], [7, 1, 9]],
        [[2, 4], [5, 7, 9], [3, 8, 11, 6]],
    ]

    logits, target = dmnc_forward(params, input_visits)
    jax.block_until_ready(logits)
    jax.block_until_ready(target)

    t_dec = len(input_visits[-1][-1]) + 1
    assert logits.shape == (t_dec, params["output_size"])
    assert target.shape == (t_dec,)
    assert bool(jnp.all(jnp.isfinite(logits)))
    print("KERNEL_OK")
</pallas_src>

<mosaic_0001>
module attributes {stable_mosaic.version = 11 : i64} {
  func.func @dmnc_kernel(%arg0: i32, %arg1: memref<8xi32, #tpu.memory_space<smem>>, %arg2: memref<8xi32, #tpu.memory_space<smem>>, %arg3: memref<1xi32, #tpu.memory_space<smem>>, %arg4: memref<8x8x128xf32, #tpu.memory_space<vmem>>, %arg5: memref<4x128x384xf32, #tpu.memory_space<vmem>>, %arg6: memref<4x128x384xf32, #tpu.memory_space<vmem>>, %arg7: memref<4x1x384xf32, #tpu.memory_space<vmem>>, %arg8: memref<4x1x384xf32, #tpu.memory_space<vmem>>, %arg9: memref<128x128xf32, #tpu.memory_space<vmem>>, %arg10: memref<1x128xf32, #tpu.memory_space<vmem>>, %arg11: memref<8x128xf32, #tpu.memory_space<vmem>>, %arg12: memref<1x128xf32, #tpu.memory_space<vmem>>, %arg13: memref<8x128xf32, #tpu.memory_space<vmem>>, %arg14: memref<8x384xf32, #tpu.memory_space<vmem>>, %arg15: memref<8x128xf32, #tpu.memory_space<vmem>>) attributes {dimension_semantics = [#tpu.dimension_semantics<arbitrary>], iteration_bounds = array<i64: 8>, scalar_prefetch = 3 : i64, scratch_operands = 4 : i64, tpu.core_type = #tpu.core_type<tc>, window_params = [{pipeline_mode = #tpu.pipeline_mode<synchronous>, transform_indices = @transform_0, window_bounds = array<i64: 8, 8, 128>}, {pipeline_mode = #tpu.pipeline_mode<synchronous>, transform_indices = @transform_1, window_bounds = array<i64: 4, 128, 384>}, {pipeline_mode = #tpu.pipeline_mode<synchronous>, transform_indices = @transform_2, window_bounds = array<i64: 4, 128, 384>}, {pipeline_mode = #tpu.pipeline_mode<synchronous>, transform_indices = @transform_3, window_bounds = array<i64: 4, 1, 384>}, {pipeline_mode = #tpu.pipeline_mode<synchronous>, transform_indices = @transform_4, window_bounds = array<i64: 4, 1, 384>}, {pipeline_mode = #tpu.pipeline_mode<synchronous>, transform_indices = @transform_5, window_bounds = array<i64: 128, 128>}, {pipeline_mode = #tpu.pipeline_mode<synchronous>, transform_indices = @transform_6, window_bounds = array<i64: 1, 128>}, {pipeline_mode = #tpu.pipeline_mode<synchronous>, transform_indices = @transform_7, window_bounds = array<i64: 8, 128>}]} {
    %c7_i32 = arith.constant 7 : i32
    %0 = arith.cmpi eq, %arg0, %c7_i32 : i32
    %c0_i32 = arith.constant 0 : i32
    %1 = arith.cmpi eq, %arg0, %c0_i32 : i32
    %2 = arith.extui %1 : i1 to i32
    %c0_i32_0 = arith.constant 0 : i32
    %3 = arith.cmpi ne, %2, %c0_i32_0 : i32
    scf.if %3 {
      %cst_18 = arith.constant 0.000000e+00 : f32
      %41 = vector.broadcast %cst_18 : f32 to vector<1x128xf32>
      %c0_19 = arith.constant 0 : index
      %c0_20 = arith.constant 0 : index
      %42 = vector.load %arg12[%c0_19, %c0_20] : memref<1x128xf32, #tpu.memory_space<vmem>>, vector<1x128xf32>
      tpu.vector_store %arg12[%c0_19, %c0_20], %41 {strides = array<i32>} : memref<1x128xf32, #tpu.memory_space<vmem>>, vector<1x128xf32>,
      %cst_21 = arith.constant 0.000000e+00 : f32
      %43 = vector.broadcast %cst_21 : f32 to vector<8x128xf32>
      %c0_22 = arith.constant 0 : index
      %c0_23 = arith.constant 0 : index
      %44 = vector.load %arg13[%c0_22, %c0_23] : memref<8x128xf32, #tpu.memory_space<vmem>>, vector<8x128xf32>
      tpu.vector_store %arg13[%c0_22, %c0_23], %43 {strides = array<i32>} : memref<8x128xf32, #tpu.memory_space<vmem>>, vector<8x128xf32>,
      %cst_24 = arith.constant 0.000000e+00 : f32
      %45 = vector.broadcast %cst_24 : f32 to vector<8x128xf32>
      %c0_25 = arith.constant 0 : index
      %c0_26 = arith.constant 0 : index
      %46 = vector.load %arg15[%c0_25, %c0_26] : memref<8x128xf32, #tpu.memory_space<vmem>>, vector<8x128xf32>
      tpu.vector_store %arg15[%c0_25, %c0_26], %45 {strides = array<i32>} : memref<8x128xf32, #tpu.memory_space<vmem>>, vector<8x128xf32>,
    } else {
    }
    %4 = arith.extui %0 : i1 to i32
    %c0_i32_1 = arith.constant 0 : i32
    %5 = arith.cmpi ne, %4, %c0_i32_1 : i32
    scf.if %5 {
      %41 = tpu.iota {dimensions = array<i32: 0>} : vector<8x128xi32>
      %c3_i32 = arith.constant 3 : i32
      %42 = vector.broadcast %c3_i32 : i32 to vector<8x128xi32>
      %43 = arith.cmpi slt, %41, %42 : vector<8x128xi32>
      %c0_18 = arith.constant 0 : index
      %c0_19 = arith.constant 0 : index
      %44 = vector.load %arg13[%c0_18, %c0_19] : memref<8x128xf32, #tpu.memory_space<vmem>>, vector<8x128xf32>
      %cst_20 = arith.constant 0.000000e+00 : f32
      %45 = vector.broadcast %cst_20 : f32 to vector<8x128xf32>
      %46 = arith.select %43, %44, %45 : vector<8x128xi1>, vector<8x128xf32>
      %cst_21 = arith.constant dense<0.000000e+00> : vector<128xf32>
      %47 = vector.multi_reduction <add>, %46, %cst_21 [0] : vector<8x128xf32> to vector<128xf32>
      %48 = vector.shape_cast %47 : vector<128xf32> to vector<1x128xf32>
      %c0_22 = arith.constant 0 : index
      %49 = memref.load %arg3[%c0_22] : memref<1xi32, #tpu.memory_space<smem>>
      %c1_i32 = arith.constant 1 : i32
      %50 = arith.maxsi %49, %c1_i32 : i32
      %51 = arith.sitofp %50 : i32 to f32
      %cst_23 = arith.constant 1.000000e+00 : f32
      %52 = arith.divf %cst_23, %51 : f32
      %53 = vector.broadcast %52 : f32 to vector<1x128xf32>
      %54 = arith.mulf %48, %53 : vector<1x128xf32>
      %c0_24 = arith.constant 0 : index
      %c0_25 = arith.constant 0 : index
      %55 = vector.load %arg12[%c0_24, %c0_25] : memref<1x128xf32, #tpu.memory_space<vmem>>, vector<1x128xf32>
      tpu.vector_store %arg12[%c0_24, %c0_25], %54 {strides = array<i32>} : memref<1x128xf32, #tpu.memory_space<vmem>>, vector<1x128xf32>,
    } else {
    }
    %6 = arith.index_cast %arg0 : i32 to index
    %7 = memref.load %arg2[%6] : memref<8xi32, #tpu.memory_space<smem>>
    %8 = arith.index_cast %arg0 : i32 to index
    %9 = memref.load %arg1[%8] : memref<8xi32, #tpu.memory_space<smem>>
    %10 = arith.index_cast %arg0 : i32 to index
    %c0 = arith.constant 0 : index
    %c0_2 = arith.constant 0 : index
    %11 = vector.load %arg4[%10, %c0, %c0_2] : memref<8x8x128xf32, #tpu.memory_space<vmem>>, vector<1x8x128xf32>
    %12 = vector.shape_cast %11 : vector<1x8x128xf32> to vector<8x128xf32>
    %13 = arith.index_cast %7 : i32 to index
    %c0_3 = arith.constant 0 : index
    %c0_4 = arith.constant 0 : index
    %14 = vector.load %arg5[%13, %c0_3, %c0_4] : memref<4x128x384xf32, #tpu.memory_space<vmem>>, vector<1x128x384xf32>
    %15 = vector.shape_cast %14 : vector<1x128x384xf32> to vector<128x384xf32>
    %cst = arith.constant dense<0.000000e+00> : vector<8x384xf32>
    %16 = tpu.matmul %12, %15, %cst {dimension_numbers = #tpu.dot_dimension_numbers<[1], [0], [0], [1], [0, 0, 1, 1], [], []>} : vector<8x128xf32>, vector<128x384xf32>, vector<8x384xf32> -> vector<8x384xf32>
    %17 = arith.index_cast %7 : i32 to index
    %c0_5 = arith.constant 0 : index
    %c0_6 = arith.constant 0 : index
    %18 = vector.load %arg7[%17, %c0_5, %c0_6] : memref<4x1x384xf32, #tpu.memory_space<vmem>>, vector<1x1x384xf32>
    %19 = vector.shape_cast %18 : vector<1x1x384xf32> to vector<1x384xf32>
    %20 = vector.broadcast %19 : vector<1x384xf32> to vector<8x384xf32>
    %21 = arith.addf %16, %20 : vector<8x384xf32>
    %c0_7 = arith.constant 0 : index
    %c0_8 = arith.constant 0 : index
    %22 = vector.load %arg14[%c0_7, %c0_8] : memref<8x384xf32, #tpu.memory_space<vmem>>, vector<8x384xf32>
    tpu.vector_store %arg14[%c0_7, %c0_8], %21 {strides = array<i32>} : memref<8x384xf32, #tpu.memory_space<vmem>>, vector<8x384xf32>,
    %true = arith.constant true
    %23 = arith.xori %0, %true : i1
    %24 = arith.extui %23 : i1 to i32
    %c0_i32_9 = arith.constant 0 : i32
    %25 = arith.cmpi ne, %24, %c0_i32_9 : i32
    scf.if %25 {
      %c0_18 = arith.constant 0 : index
      %c0_19 = arith.constant 0 : index
      %41 = vector.load %arg12[%c0_18, %c0_19] : memref<1x128xf32, #tpu.memory_space<vmem>>, vector<1x128xf32>
      %c0_i32_20 = arith.constant 0 : i32
      %42 = arith.subi %9, %c0_i32_20 : i32
      %43 = arith.addi %c0_i32_20, %42 : i32
      %c1_i32 = arith.constant 1 : i32
      %44 = scf.for %arg16 = %c0_i32_20 to %43 step %c1_i32 iter_args(%arg17 = %41) -> (vector<1x128xf32>)  : i32 {
        %46 = arith.index_cast %arg16 : i32 to index
        %c0_23 = arith.constant 0 : index
        %47 = vector.load %arg14[%46, %c0_23] : memref<8x384xf32, #tpu.memory_space<vmem>>, vector<1x384xf32>
        %48 = arith.index_cast %7 : i32 to index
        %c0_24 = arith.constant 0 : index
        %c0_25 = arith.constant 0 : index
        %49 = vector.load %arg6[%48, %c0_24, %c0_25] : memref<4x128x384xf32, #tpu.memory_space<vmem>>, vector<1x128x384xf32>
        %50 = vector.shape_cast %49 : vector<1x128x384xf32> to vector<128x384xf32>
        %cst_26 = arith.constant dense<0.000000e+00> : vector<1x384xf32>
        %51 = tpu.matmul %arg17, %50, %cst_26 {dimension_numbers = #tpu.dot_dimension_numbers<[1], [0], [0], [1], [0, 0, 1, 1], [], []>} : vector<1x128xf32>, vector<128x384xf32>, vector<1x384xf32> -> vector<1x384xf32>
        %52 = arith.index_cast %7 : i32 to index
        %c0_27 = arith.constant 0 : index
        %c0_28 = arith.constant 0 : index
        %53 = vector.load %arg8[%52, %c0_27, %c0_28] : memref<4x1x384xf32, #tpu.memory_space<vmem>>, vector<1x1x384xf32>
        %54 = vector.shape_cast %53 : vector<1x1x384xf32> to vector<1x384xf32>
        %55 = arith.addf %51, %54 : vector<1x384xf32>
        %56 = vector.extract_strided_slice %47 {offsets = [0, 0], sizes = [1, 128], strides = [1, 1]} : vector<1x384xf32> to vector<1x128xf32>
        %57 = vector.extract_strided_slice %55 {offsets = [0, 0], sizes = [1, 128], strides = [1, 1]} : vector<1x384xf32> to vector<1x128xf32>
        %58 = arith.addf %56, %57 : vector<1x128xf32>
        %59 = arith.negf %58 : vector<1x128xf32>
        %60 = math.exp %59 : vector<1x128xf32>
        %cst_29 = arith.constant 1.000000e+00 : f32
        %61 = vector.broadcast %cst_29 : f32 to vector<1x128xf32>
        %62 = arith.addf %61, %60 : vector<1x128xf32>
        %63 = arith.divf %61, %62 : vector<1x128xf32>
        %64 = vector.extract_strided_slice %47 {offsets = [0, 128], sizes = [1, 128], strides = [1, 1]} : vector<1x384xf32> to vector<1x128xf32>
        %65 = vector.extract_strided_slice %55 {offsets = [0, 128], sizes = [1, 128], strides = [1, 1]} : vector<1x384xf32> to vector<1x128xf32>
        %66 = arith.addf %64, %65 : vector<1x128xf32>
        %67 = arith.negf %66 : vector<1x128xf32>
        %68 = math.exp %67 : vector<1x128xf32>
        %cst_30 = arith.constant 1.000000e+00 : f32
        %69 = vector.broadcast %cst_30 : f32 to vector<1x128xf32>
        %70 = arith.addf %69, %68 : vector<1x128xf32>
        %71 = arith.divf %69, %70 : vector<1x128xf32>
        %72 = vector.extract_strided_slice %47 {offsets = [0, 256], sizes = [1, 128], strides = [1, 1]} : vector<1x384xf32> to vector<1x128xf32>
        %73 = vector.extract_strided_slice %55 {offsets = [0, 256], sizes = [1, 128], strides = [1, 1]} : vector<1x384xf32> to vector<1x128xf32>
        %74 = arith.mulf %63, %73 : vector<1x128xf32>
        %75 = arith.addf %72, %74 : vector<1x128xf32>
        %76 = math.tanh %75 : vector<1x128xf32>
        %cst_31 = arith.constant 1.000000e+00 : f32
        %77 = vector.broadcast %cst_31 : f32 to vector<1x128xf32>
        %78 = arith.subf %77, %71 : vector<1x128xf32>
        %79 = arith.mulf %78, %76 : vector<1x128xf32>
        %80 = arith.mulf %71, %arg17 : vector<1x128xf32>
        %81 = arith.addf %79, %80 : vector<1x128xf32>
        scf.yield %81 : vector<1x128xf32>
      }
      %c0_21 = arith.constant 0 : index
      %c0_22 = arith.constant 0 : index
      %45 = vector.load %arg12[%c0_21, %c0_22] : memref<1x128xf32, #tpu.memory_space<vmem>>, vector<1x128xf32>
      tpu.vector_store %arg12[%c0_21, %c0_22], %44 {strides = array<i32>} : memref<1x128xf32, #tpu.memory_space<vmem>>, vector<1x128xf32>,
    } else {
    }
    %26 = arith.extui %0 : i1 to i32
    %c0_i32_10 = arith.constant 0 : i32
    %27 = arith.cmpi ne, %26, %c0_i32_10 : i32
    scf.if %27 {
      %c0_18 = arith.constant 0 : index
      %c0_19 = arith.constant 0 : index
      %41 = vector.load %arg12[%c0_18, %c0_19] : memref<1x128xf32, #tpu.memory_space<vmem>>, vector<1x128xf32>
      %c0_i32_20 = arith.constant 0 : i32
      %42 = arith.subi %9, %c0_i32_20 : i32
      %43 = arith.addi %c0_i32_20, %42 : i32
      %c1_i32 = arith.constant 1 : i32
      %44 = scf.for %arg16 = %c0_i32_20 to %43 step %c1_i32 iter_args(%arg17 = %41) -> (vector<1x128xf32>)  : i32 {
        %46 = arith.index_cast %arg16 : i32 to index
        %c0_23 = arith.constant 0 : index
        %47 = vector.load %arg14[%46, %c0_23] : memref<8x384xf32, #tpu.memory_space<vmem>>, vector<1x384xf32>
        %48 = arith.index_cast %7 : i32 to index
        %c0_24 = arith.constant 0 : index
        %c0_25 = arith.constant 0 : index
        %49 = vector.load %arg6[%48, %c0_24, %c0_25] : memref<4x128x384xf32, #tpu.memory_space<vmem>>, vector<1x128x384xf32>
        %50 = vector.shape_cast %49 : vector<1x128x384xf32> to vector<128x384xf32>
        %cst_26 = arith.constant dense<0.000000e+00> : vector<1x384xf32>
        %51 = tpu.matmul %arg17, %50, %cst_26 {dimension_numbers = #tpu.dot_dimension_numbers<[1], [0], [0], [1], [0, 0, 1, 1], [], []>} : vector<1x128xf32>, vector<128x384xf32>, vector<1x384xf32> -> vector<1x384xf32>
        %52 = arith.index_cast %7 : i32 to index
        %c0_27 = arith.constant 0 : index
        %c0_28 = arith.constant 0 : index
        %53 = vector.load %arg8[%52, %c0_27, %c0_28] : memref<4x1x384xf32, #tpu.memory_space<vmem>>, vector<1x1x384xf32>
        %54 = vector.shape_cast %53 : vector<1x1x384xf32> to vector<1x384xf32>
        %55 = arith.addf %51, %54 : vector<1x384xf32>
        %56 = vector.extract_strided_slice %47 {offsets = [0, 0], sizes = [1, 128], strides = [1, 1]} : vector<1x384xf32> to vector<1x128xf32>
        %57 = vector.extract_strided_slice %55 {offsets = [0, 0], sizes = [1, 128], strides = [1, 1]} : vector<1x384xf32> to vector<1x128xf32>
        %58 = arith.addf %56, %57 : vector<1x128xf32>
        %59 = arith.negf %58 : vector<1x128xf32>
        %60 = math.exp %59 : vector<1x128xf32>
        %cst_29 = arith.constant 1.000000e+00 : f32
        %61 = vector.broadcast %cst_29 : f32 to vector<1x128xf32>
        %62 = arith.addf %61, %60 : vector<1x128xf32>
        %63 = arith.divf %61, %62 : vector<1x128xf32>
        %64 = vector.extract_strided_slice %47 {offsets = [0, 128], sizes = [1, 128], strides = [1, 1]} : vector<1x384xf32> to vector<1x128xf32>
        %65 = vector.extract_strided_slice %55 {offsets = [0, 128], sizes = [1, 128], strides = [1, 1]} : vector<1x384xf32> to vector<1x128xf32>
        %66 = arith.addf %64, %65 : vector<1x128xf32>
        %67 = arith.negf %66 : vector<1x128xf32>
        %68 = math.exp %67 : vector<1x128xf32>
        %cst_30 = arith.constant 1.000000e+00 : f32
        %69 = vector.broadcast %cst_30 : f32 to vector<1x128xf32>
        %70 = arith.addf %69, %68 : vector<1x128xf32>
        %71 = arith.divf %69, %70 : vector<1x128xf32>
        %72 = vector.extract_strided_slice %47 {offsets = [0, 256], sizes = [1, 128], strides = [1, 1]} : vector<1x384xf32> to vector<1x128xf32>
        %73 = vector.extract_strided_slice %55 {offsets = [0, 256], sizes = [1, 128], strides = [1, 1]} : vector<1x384xf32> to vector<1x128xf32>
        %74 = arith.mulf %63, %73 : vector<1x128xf32>
        %75 = arith.addf %72, %74 : vector<1x128xf32>
        %76 = math.tanh %75 : vector<1x128xf32>
        %cst_31 = arith.constant 1.000000e+00 : f32
        %77 = vector.broadcast %cst_31 : f32 to vector<1x128xf32>
        %78 = arith.subf %77, %71 : vector<1x128xf32>
        %79 = arith.mulf %78, %76 : vector<1x128xf32>
        %80 = arith.mulf %71, %arg17 : vector<1x128xf32>
        %81 = arith.addf %79, %80 : vector<1x128xf32>
        %82 = arith.index_cast %arg16 : i32 to index
        %c0_32 = arith.constant 0 : index
        %83 = vector.load %arg15[%82, %c0_32] : memref<8x128xf32, #tpu.memory_space<vmem>>, vector<1x128xf32>
        tpu.vector_store %arg15[%82, %c0_32], %81 {strides = array<i32>} : memref<8x128xf32, #tpu.memory_space<vmem>>, vector<1x128xf32>,
        scf.yield %81 : vector<1x128xf32>
      }
      %c0_21 = arith.constant 0 : index
      %c0_22 = arith.constant 0 : index
      %45 = vector.load %arg12[%c0_21, %c0_22] : memref<1x128xf32, #tpu.memory_space<vmem>>, vector<1x128xf32>
      tpu.vector_store %arg12[%c0_21, %c0_22], %44 {strides = array<i32>} : memref<1x128xf32, #tpu.memory_space<vmem>>, vector<1x128xf32>,
    } else {
    }
    %28 = tpu.iota {dimensions = array<i32: 0>} : vector<8x1xi32>
    %29 = vector.broadcast %7 : i32 to vector<8x1xi32>
    %30 = arith.cmpi eq, %28, %29 : vector<8x1xi32>
    %c0_11 = arith.constant 0 : index
    %c0_12 = arith.constant 0 : index
    %31 = vector.load %arg12[%c0_11, %c0_12] : memref<1x128xf32, #tpu.memory_space<vmem>>, vector<1x128xf32>
    %c0_13 = arith.constant 0 : index
    %c0_14 = arith.constant 0 : index
    %32 = vector.load %arg13[%c0_13, %c0_14] : memref<8x128xf32, #tpu.memory_space<vmem>>, vector<8x128xf32>
    %33 = vector.shape_cast %30 : vector<8x1xi1> to vector<8x1xi1>
    %34 = vector.broadcast %33 : vector<8x1xi1> to vector<8x128xi1>
    %35 = vector.shape_cast %31 : vector<1x128xf32> to vector<1x128xf32>
    %36 = vector.broadcast %35 : vector<1x128xf32> to vector<8x128xf32>
    %37 = arith.select %34, %36, %32 : vector<8x128xi1>, vector<8x128xf32>
    %c0_15 = arith.constant 0 : index
    %c0_16 = arith.constant 0 : index
    %38 = vector.load %arg13[%c0_15, %c0_16] : memref<8x128xf32, #tpu.memory_space<vmem>>, vector<8x128xf32>
    tpu.vector_store %arg13[%c0_15, %c0_16], %37 {strides = array<i32>} : memref<8x128xf32, #tpu.memory_space<vmem>>, vector<8x128xf32>,
    %39 = arith.extui %0 : i1 to i32
    %c0_i32_17 = arith.constant 0 : i32
    %40 = arith.cmpi ne, %39, %c0_i32_17 : i32
    scf.if %40 {
      %c0_18 = arith.constant 0 : index
      %c0_19 = arith.constant 0 : index
      %41 = vector.load %arg15[%c0_18, %c0_19] : memref<8x128xf32, #tpu.memory_space<vmem>>, vector<8x128xf32>
      %c0_20 = arith.constant 0 : index
      %c0_21 = arith.constant 0 : index
      %42 = vector.load %arg9[%c0_20, %c0_21] : memref<128x128xf32, #tpu.memory_space<vmem>>, vector<128x128xf32>
      %cst_22 = arith.constant dense<0.000000e+00> : vector<8x128xf32>
      %43 = tpu.matmul %41, %42, %cst_22 {dimension_numbers = #tpu.dot_dimension_numbers<[1], [0], [0], [1], [0, 0, 1, 1], [], []>} : vector<8x128xf32>, vector<128x128xf32>, vector<8x128xf32> -> vector<8x128xf32>
      %c0_23 = arith.constant 0 : index
      %c0_24 = arith.constant 0 : index
      %44 = vector.load %arg10[%c0_23, %c0_24] : memref<1x128xf32, #tpu.memory_space<vmem>>, vector<1x128xf32>
      %45 = vector.broadcast %44 : vector<1x128xf32> to vector<8x128xf32>
      %46 = arith.addf %43, %45 : vector<8x128xf32>
      %c0_25 = arith.constant 0 : index
      %c0_26 = arith.constant 0 : index
      %47 = vector.load %arg11[%c0_25, %c0_26] : memref<8x128xf32, #tpu.memory_space<vmem>>, vector<8x128xf32>
      tpu.vector_store %arg11[%c0_25, %c0_26], %46 {strides = array<i32>} : memref<8x128xf32, #tpu.memory_space<vmem>>, vector<8x128xf32>,
    } else {
    }
    return
  }
  func.func @transform_0(%arg0: i32, %arg1: memref<8xi32, #tpu.memory_space<smem>>, %arg2: memref<8xi32, #tpu.memory_space<smem>>, %arg3: memref<1xi32, #tpu.memory_space<smem>>) -> (i32, i32, i32) {
    %c0_i32 = arith.constant 0 : i32
    %c0_i32_0 = arith.constant 0 : i32
    %c0_i32_1 = arith.constant 0 : i32
    %c0_i32_2 = arith.constant 0 : i32
    return %c0_i32, %c0_i32_0, %c0_i32_1 : i32, i32, i32
  }
  func.func @transform_1(%arg0: i32, %arg1: memref<8xi32, #tpu.memory_space<smem>>, %arg2: memref<8xi32, #tpu.memory_space<smem>>, %arg3: memref<1xi32, #tpu.memory_space<smem>>) -> (i32, i32, i32) {
    %c0_i32 = arith.constant 0 : i32
    %c0_i32_0 = arith.constant 0 : i32
    %c0_i32_1 = arith.constant 0 : i32
    %c0_i32_2 = arith.constant 0 : i32
    return %c0_i32, %c0_i32_0, %c0_i32_1 : i32, i32, i32
  }
  func.func @transform_2(%arg0: i32, %arg1: memref<8xi32, #tpu.memory_space<smem>>, %arg2: memref<8xi32, #tpu.memory_space<smem>>, %arg3: memref<1xi32, #tpu.memory_space<smem>>) -> (i32, i32, i32) {
    %c0_i32 = arith.constant 0 : i32
    %c0_i32_0 = arith.constant 0 : i32
    %c0_i32_1 = arith.constant 0 : i32
    %c0_i32_2 = arith.constant 0 : i32
    return %c0_i32, %c0_i32_0, %c0_i32_1 : i32, i32, i32
  }
  func.func @transform_3(%arg0: i32, %arg1: memref<8xi32, #tpu.memory_space<smem>>, %arg2: memref<8xi32, #tpu.memory_space<smem>>, %arg3: memref<1xi32, #tpu.memory_space<smem>>) -> (i32, i32, i32) {
    %c0_i32 = arith.constant 0 : i32
    %c0_i32_0 = arith.constant 0 : i32
    %c0_i32_1 = arith.constant 0 : i32
    %c0_i32_2 = arith.constant 0 : i32
    return %c0_i32, %c0_i32_0, %c0_i32_1 : i32, i32, i32
  }
  func.func @transform_4(%arg0: i32, %arg1: memref<8xi32, #tpu.memory_space<smem>>, %arg2: memref<8xi32, #tpu.memory_space<smem>>, %arg3: memref<1xi32, #tpu.memory_space<smem>>) -> (i32, i32, i32) {
    %c0_i32 = arith.constant 0 : i32
    %c0_i32_0 = arith.constant 0 : i32
    %c0_i32_1 = arith.constant 0 : i32
    %c0_i32_2 = arith.constant 0 : i32
    return %c0_i32, %c0_i32_0, %c0_i32_1 : i32, i32, i32
  }
  func.func @transform_5(%arg0: i32, %arg1: memref<8xi32, #tpu.memory_space<smem>>, %arg2: memref<8xi32, #tpu.memory_space<smem>>, %arg3: memref<1xi32, #tpu.memory_space<smem>>) -> (i32, i32) {
    %c0_i32 = arith.constant 0 : i32
    %c0_i32_0 = arith.constant 0 : i32
    %c0_i32_1 = arith.constant 0 : i32
    return %c0_i32, %c0_i32_0 : i32, i32
  }
  func.func @transform_6(%arg0: i32, %arg1: memref<8xi32, #tpu.memory_space<smem>>, %arg2: memref<8xi32, #tpu.memory_space<smem>>, %arg3: memref<1xi32, #tpu.memory_space<smem>>) -> (i32, i32) {
    %c0_i32 = arith.constant 0 : i32
    %c0_i32_0 = arith.constant 0 : i32
    %c0_i32_1 = arith.constant 0 : i32
    return %c0_i32, %c0_i32_0 : i32, i32
  }
  func.func @transform_7(%arg0: i32, %arg1: memref<8xi32, #tpu.memory_space<smem>>, %arg2: memref<8xi32, #tpu.memory_space<smem>>, %arg3: memref<1xi32, #tpu.memory_space<smem>>) -> (i32, i32) {
    %c0_i32 = arith.constant 0 : i32
    %c0_i32_0 = arith.constant 0 : i32
    %c0_i32_1 = arith.constant 0 : i32
    return %c0_i32, %c0_i32_0 : i32, i32
  }
}

</mosaic_0001>

<llo_original>
// kernel: tpu_custom_call.1
$region0: #{tpu_custom_call.1}
  #allocation0 [shape = 'u32[]', space=smem, size = 0x4, offset = 0x4, fixed_abs, tag = 'smem constant byte address 0x4 - core index']
  #allocation1 [shape = 'u32[144,128]{1,0:T(1,128)}', space=vmem, size = 0x12000, scoped, tag = 'internal scratch']
  #allocation2 [shape = 'f32[1,128]{1,0:T(1,128)}', space=vmem, size = 0x200, scoped, tag = 'scratch operand']
  #allocation3 [shape = 'f32[8,128]{1,0:T(8,128)}', space=vmem, size = 0x1000, scoped, tag = 'scratch operand']
  #allocation4 [shape = 'f32[8,384]{1,0:T(8,128)}', space=vmem, size = 0x3000, scoped, tag = 'scratch operand']
  #allocation5 [shape = 'f32[8,128]{1,0:T(8,128)}', space=vmem, size = 0x1000, scoped, tag = 'scratch operand']
  #allocation6 [shape = 's32[1]{0}', space=sflag, size = 0x4, scoped, tag = 'scoped memory for tpu_custom_call.1']
  #allocation7 [shape = 'u8[512]{0}', space=smem, size = 0x200, scoped, tag = 'prefetched SMEM operand 0']
  #allocation8 [shape = 'u8[512]{0}', space=smem, size = 0x200, scoped, tag = 'prefetched SMEM operand 1']
  #allocation9 [shape = 's32[1]{0:T(128)S(6)}', space=smem, size = 0x200, scoped, tag = 'prefetched SMEM operand 2']
  %s0 = inlined_call_operand.vmem [shape: s32[8], index: 0, kind: input, shape index: {}]
  %s1 = inlined_call_operand.vmem [shape: s32[8], index: 1, kind: input, shape index: {}]
  %s2 = inlined_call_operand.<no memory space> [shape: s32[1], index: 2, kind: input, shape index: {}]
  %s3 = inlined_call_operand.hbm [shape: f32[8,8,128], index: 3, kind: input, shape index: {}]
  %s4 = inlined_call_operand.hbm [shape: f32[4,128,384], index: 4, kind: input, shape index: {}]
  %s5 = inlined_call_operand.hbm [shape: f32[4,128,384], index: 5, kind: input, shape index: {}]
  %s6 = inlined_call_operand.vmem [shape: f32[4,1,384], index: 6, kind: input, shape index: {}]
  %s7 = inlined_call_operand.vmem [shape: f32[4,1,384], index: 7, kind: input, shape index: {}]
  %s8 = inlined_call_operand.hbm [shape: f32[128,128], index: 8, kind: input, shape index: {}]
  %s9 = inlined_call_operand.vmem [shape: f32[1,128], index: 9, kind: input, shape index: {}]
  %s10 = inlined_call_operand.hbm [shape: f32[8,128], index: 10, kind: output, shape index: {}]
  %s11 = sld [smem:[#allocation0]]
  $region111: #{tpu_custom_call.1} parent=0
    _
  %s13 = ssub.s32 1, %s11
  %s14 = scalar_select 0, %s13, %s11
  %s15 = sshll.u32 %s0, 4
  %s16 = int_to_ptr.vmem [resolvable:$true] %s15
  %18 = dma.vmem_to_smem %s16, 16, [#allocation7], [#allocation6]
  %s19 = sshll.u32 %s1, 4
  %s20 = int_to_ptr.vmem [resolvable:$true] %s19
  %22 = dma.vmem_to_smem %s20, 16, [#allocation8], [#allocation6]
  %23 = sst [smem:[#allocation9]] %s2
  %24 = dma.done [#allocation6], 32
  %25 = sfence
  $region1: #{tpu_custom_call.1} parent=0
    #allocation10 [shape = 'u8[32768]{0}', space=vmem, size = 0x8000, scoped, tag = 'input window, operand 3, single buffered']
    #allocation11 [shape = 's32[2]{0}', space=sflag, size = 0x8, scoped, tag = 'scoped memory for tpu_custom_call.1']
    #allocation12 [shape = 's32[2]{0}', space=sflag, size = 0x8, scoped, tag = 'scoped memory for tpu_custom_call.1']
    #allocation13 [shape = 'u8[786432]{0}', space=vmem, size = 0xc0000, scoped, tag = 'input window, operand 4, single buffered']
    #allocation14 [shape = 's32[1]{0}', space=sflag, size = 0x4, scoped, tag = 'scoped memory for tpu_custom_call.1']
    #allocation15 [shape = 'u8[786432]{0}', space=vmem, size = 0xc0000, scoped, tag = 'input window, operand 5, single buffered']
    #allocation16 [shape = 'u8[65536]{0}', space=vmem, size = 0x10000, scoped, tag = 'input window, operand 8, single buffered']
    #allocation17 [shape = 's32[1]{0}', space=sflag, size = 0x4, scoped, tag = 'scoped memory for tpu_custom_call.1']
    #allocation18 [shape = 'u8[4096]{0}', space=vmem, size = 0x1000, scoped, tag = 'output window, operand 0, single buffered']
    %26 = vsyncpa [#allocation11], 0
    %27 = vsyncpa [#allocation14], 0
    %28 = vsyncpa [#allocation17], 0
    %29 = vsyncpa [#allocation12], 0
    loop: start=0, step=1, limit=10
    $region2: #{tpu_custom_call.1} parent=1 // loop_pre_header
      _
    $region3: #{tpu_custom_call.1} parent=1 // loop_header
      %s31 = sphi 0, %s35
      %p32 = scmp.ge.s32.totalorder %s31, 10
      %s39 = sphi 0, %s39
      %s41 = sphi 0, %s39
      %s42 = sphi 0, %s41
      %s56 = sphi 0, %s42
      %s60 = sphi 0, %s60
      %s62 = sphi 0, %s60
      %s63 = sphi 0, %s62
      %s77 = sphi 0, %s63
      %s81 = sphi 0, %s81
      %s83 = sphi 0, %s81
      %s84 = sphi 0, %s83
      %s98 = sphi 0, %s84
      %s102 = sphi 0, %s102
      %s104 = sphi 0, %s102
      %s105 = sphi 0, %s104
      %s119 = sphi 0, %s105
      %s123 = sphi 0, %s123
      %s125 = sphi 0, %s123
      %s126 = sphi 0, %s125
      %s140 = sphi 0, %s126
      %s144 = sphi 0, %s144
      %s146 = sphi 0, %s144
      %s147 = sphi 0, %s146
      %s161 = sphi 0, %s147
      %s165 = sphi 0, %s165
      %s167 = sphi 0, %s165
      %s168 = sphi 0, %s167
      %s182 = sphi 0, %s168
      %s186 = sphi 0, %s186
      %s188 = sphi 0, %s186
      %s189 = sphi 0, %s188
      %s203 = sphi 0, %s189
    $region4: #{tpu_custom_call.1} parent=1 // loop_header_branch
      %34 = sbr.rel (%p32) target = $region8
    $region5: #{tpu_custom_call.1} parent=1 // loop_body
      %s36 = ssub.s32 %s31, 1
      %s37 = ssub.s32 %s31, 2
      %s38 = sadd.s32 %s31, 1
      %s40 = sadd.s32 %s39, 1
      %p43 = scmp.eq.s32.totalorder %s31, 7
      %p44 = scmp.ne.s32.totalorder %s39, %s41
      %p45 = scmp.eq.s32.totalorder %s31, 0
      %p46 = por %p44, %p45
      %p47 = scmp.ne.s32.totalorder %s39, %s41
      %p48 = scmp.eq.s32.totalorder %s36, 7
      %p49 = por %p47, %p48
      %p50 = scmp.ne.s32.totalorder %s41, %s42
      %p51 = scmp.eq.s32.totalorder %s36, 0
      %p52 = por %p50, %p51
      %p53 = scmp.ne.s32.totalorder %s41, %s42
      %p54 = scmp.eq.s32.totalorder %s37, 7
      %p55 = por %p53, %p54
      %p57 = scmp.ne.s32.totalorder %s42, %s56
      %p58 = scmp.eq.s32.totalorder %s37, 0
      %p59 = por %p57, %p58
      %s61 = sadd.s32 %s60, 1
      %p64 = scmp.eq.s32.totalorder %s31, 7
      %p65 = scmp.ne.s32.totalorder %s60, %s62
      %p66 = scmp.eq.s32.totalorder %s31, 0
      %p67 = por %p65, %p66
      %p68 = scmp.ne.s32.totalorder %s60, %s62
      %p69 = scmp.eq.s32.totalorder %s36, 7
      %p70 = por %p68, %p69
      %p71 = scmp.ne.s32.totalorder %s62, %s63
      %p72 = scmp.eq.s32.totalorder %s36, 0
      %p73 = por %p71, %p72
      %p74 = scmp.ne.s32.totalorder %s62, %s63
      %p75 = scmp.eq.s32.totalorder %s37, 7
      %p76 = por %p74, %p75
      %p78 = scmp.ne.s32.totalorder %s63, %s77
      %p79 = scmp.eq.s32.totalorder %s37, 0
      %p80 = por %p78, %p79
      %s82 = sadd.s32 %s81, 1
      %p85 = scmp.eq.s32.totalorder %s31, 7
      %p86 = scmp.ne.s32.totalorder %s81, %s83
      %p87 = scmp.eq.s32.totalorder %s31, 0
      %p88 = por %p86, %p87
      %p89 = scmp.ne.s32.totalorder %s81, %s83
      %p90 = scmp.eq.s32.totalorder %s36, 7
      %p91 = por %p89, %p90
      %p92 = scmp.ne.s32.totalorder %s83, %s84
      %p93 = scmp.eq.s32.totalorder %s36, 0
      %p94 = por %p92, %p93
      %p95 = scmp.ne.s32.totalorder %s83, %s84
      %p96 = scmp.eq.s32.totalorder %s37, 7
      %p97 = por %p95, %p96
      %p99 = scmp.ne.s32.totalorder %s84, %s98
      %p100 = scmp.eq.s32.totalorder %s37, 0
      %p101 = por %p99, %p100
      %s103 = sadd.s32 %s102, 1
      %p106 = scmp.eq.s32.totalorder %s31, 7
      %p107 = scmp.ne.s32.totalorder %s102, %s104
      %p108 = scmp.eq.s32.totalorder %s31, 0
      %p109 = por %p107, %p108
      %p110 = scmp.ne.s32.totalorder %s102, %s104
      %p111 = scmp.eq.s32.totalorder %s36, 7
      %p112 = por %p110, %p111
      %p113 = scmp.ne.s32.totalorder %s104, %s105
      %p114 = scmp.eq.s32.totalorder %s36, 0
      %p115 = por %p113, %p114
      %p116 = scmp.ne.s32.totalorder %s104, %s105
      %p117 = scmp.eq.s32.totalorder %s37, 7
      %p118 = por %p116, %p117
      %p120 = scmp.ne.s32.totalorder %s105, %s119
      %p121 = scmp.eq.s32.totalorder %s37, 0
      %p122 = por %p120, %p121
      %s124 = sadd.s32 %s123, 1
      %p127 = scmp.eq.s32.totalorder %s31, 7
      %p128 = scmp.ne.s32.totalorder %s123, %s125
      %p129 = scmp.eq.s32.totalorder %s31, 0
      %p130 = por %p128, %p129
      %p131 = scmp.ne.s32.totalorder %s123, %s125
      %p132 = scmp.eq.s32.totalorder %s36, 7
      %p133 = por %p131, %p132
      %p134 = scmp.ne.s32.totalorder %s125, %s126
      %p135 = scmp.eq.s32.totalorder %s36, 0
      %p136 = por %p134, %p135
      %p137 = scmp.ne.s32.totalorder %s125, %s126
      %p138 = scmp.eq.s32.totalorder %s37, 7
      %p139 = por %p137, %p138
      %p141 = scmp.ne.s32.totalorder %s126, %s140
      %p142 = scmp.eq.s32.totalorder %s37, 0
      %p143 = por %p141, %p142
      %s145 = sadd.s32 %s144, 1
      %p148 = scmp.eq.s32.totalorder %s31, 7
      %p149 = scmp.ne.s32.totalorder %s144, %s146
      %p150 = scmp.eq.s32.totalorder %s31, 0
      %p151 = por %p149, %p150
      %p152 = scmp.ne.s32.totalorder %s144, %s146
      %p153 = scmp.eq.s32.totalorder %s36, 7
      %p154 = por %p152, %p153
      %p155 = scmp.ne.s32.totalorder %s146, %s147
      %p156 = scmp.eq.s32.totalorder %s36, 0
      %p157 = por %p155, %p156
      %p158 = scmp.ne.s32.totalorder %s146, %s147
      %p159 = scmp.eq.s32.totalorder %s37, 7
      %p160 = por %p158, %p159
      %p162 = scmp.ne.s32.totalorder %s147, %s161
      %p163 = scmp.eq.s32.totalorder %s37, 0
      %p164 = por %p162, %p163
      %s166 = sadd.s32 %s165, 1
      %p169 = scmp.eq.s32.totalorder %s31, 7
      %p170 = scmp.ne.s32.totalorder %s165, %s167
      %p171 = scmp.eq.s32.totalorder %s31, 0
      %p172 = por %p170, %p171
      %p173 = scmp.ne.s32.totalorder %s165, %s167
      %p174 = scmp.eq.s32.totalorder %s36, 7
      %p175 = por %p173, %p174
      %p176 = scmp.ne.s32.totalorder %s167, %s168
      %p177 = scmp.eq.s32.totalorder %s36, 0
      %p178 = por %p176, %p177
      %p179 = scmp.ne.s32.totalorder %s167, %s168
      %p180 = scmp.eq.s32.totalorder %s37, 7
      %p181 = por %p179, %p180
      %p183 = scmp.ne.s32.totalorder %s168, %s182
      %p184 = scmp.eq.s32.totalorder %s37, 0
      %p185 = por %p183, %p184
      %s187 = sadd.s32 %s186, 1
      %p190 = scmp.eq.s32.totalorder %s31, 7
      %p191 = scmp.ne.s32.totalorder %s186, %s188
      %p192 = scmp.eq.s32.totalorder %s31, 0
      %p193 = por %p191, %p192
      %p194 = scmp.ne.s32.totalorder %s186, %s188
      %p195 = scmp.eq.s32.totalorder %s36, 7
      %p196 = por %p194, %p195
      %p197 = scmp.ne.s32.totalorder %s188, %s189
      %p198 = scmp.eq.s32.totalorder %s36, 0
      %p199 = por %p197, %p198
      %p200 = scmp.ne.s32.totalorder %s188, %s189
      %p201 = scmp.eq.s32.totalorder %s37, 7
      %p202 = por %p200, %p201
      %p204 = scmp.ne.s32.totalorder %s189, %s203
      %p205 = scmp.eq.s32.totalorder %s37, 0
      %p206 = por %p204, %p205
      %p207 = scmp.le.s32.totalorder 1, %s31
      %p208 = scmp.lt.s32.totalorder %s31, 9
      %p209 = pnand %p207, %p208
      %p210 = pneg %p209
      // Predicated region
      $region9: #{tpu_custom_call.1} parent=5 // pred_check
        _
      $region10: #{tpu_custom_call.1} parent=5 // pred_check_branch
        %212 = sbr.rel (%p209) target = $region12
      $region11: #{tpu_custom_call.1} parent=5 // pred_region
        %s213 = ssub.s32 %s31, 1
        // Predicated region
        $region13: #{tpu_custom_call.1} parent=11 // pred_check
          %p214 = pneg %p52
        $region14: #{tpu_custom_call.1} parent=11 // pred_check_branch
          %216 = sbr.rel (%p214) target = $region16
        $region15: #{tpu_custom_call.1} parent=11 // pred_region
          %s218 = ssub.s32 1024, 1024
          %219 = vsyncadd [#allocation11], %s218
          %s220 = sshll.u32 [#allocation10], 4
          %s221 = int_to_ptr.vmem [resolvable:$true] %s220
          %226 = dma.hbm_to_vmem [thread:$0]  %s3, 1024, %s221, [#allocation11], 128, 128, 8
        $region16: #{tpu_custom_call.1} parent=11 // pred_fallthru
          _
        // Predicated region
        $region17: #{tpu_custom_call.1} parent=11 // pred_check
          %p227 = pneg %p73
        $region18: #{tpu_custom_call.1} parent=11 // pred_check_branch
          %229 = sbr.rel (%p227) target = $region20
        $region19: #{tpu_custom_call.1} parent=11 // pred_region
          %s231 = ssub.s32 24576, 24576
          %232 = vsyncadd [#allocation14], %s231
          %s233 = sshll.u32 [#allocation13], 4
          %s234 = int_to_ptr.vmem [resolvable:$true] %s233
          %239 = dma.hbm_to_vmem [thread:$0]  %s4, 24576, %s234, [#allocation14], 384, 384, 24
        $region20: #{tpu_custom_call.1} parent=11 // pred_fallthru
          _
        // Predicated region
        $region21: #{tpu_custom_call.1} parent=11 // pred_check
          %p240 = pneg %p94
        $region22: #{tpu_custom_call.1} parent=11 // pred_check_branch
          %242 = sbr.rel (%p240) target = $region24
        $region23: #{tpu_custom_call.1} parent=11 // pred_region
          %s244 = ssub.s32 24576, 24576
          %245 = vsyncadd [#allocation14], %s244
          %s246 = sshll.u32 [#allocation15], 4
          %s247 = int_to_ptr.vmem [resolvable:$true] %s246
          %252 = dma.hbm_to_vmem [thread:$0]  %s5, 24576, %s247, [#allocation14], 384, 384, 24
        $region24: #{tpu_custom_call.1} parent=11 // pred_fallthru
          _
        // Predicated region
        $region25: #{tpu_custom_call.1} parent=11 // pred_check
          %p253 = pneg %p115
        $region26: #{tpu_custom_call.1} parent=11 // pred_check_branch
          %255 = sbr.rel (%p253) target = $region28
        $region27: #{tpu_custom_call.1} parent=11 // pred_region
          _
        $region28: #{tpu_custom_call.1} parent=11 // pred_fallthru
          _
        // Predicated region
        $region29: #{tpu_custom_call.1} parent=11 // pred_check
          %p256 = pneg %p136
        $region30: #{tpu_custom_call.1} parent=11 // pred_check_branch
          %258 = sbr.rel (%p256) target = $region32
        $region31: #{tpu_custom_call.1} parent=11 // pred_region
          _
        $region32: #{tpu_custom_call.1} parent=11 // pred_fallthru
          _
        // Predicated region
        $region33: #{tpu_custom_call.1} parent=11 // pred_check
          %p259 = pneg %p157
        $region34: #{tpu_custom_call.1} parent=11 // pred_check_branch
          %261 = sbr.rel (%p259) target = $region36
        $region35: #{tpu_custom_call.1} parent=11 // pred_region
          %s263 = ssub.s32 2048, 2048
          %264 = vsyncadd [#allocation17], %s263
          %s265 = sshll.u32 [#allocation16], 4
          %s266 = int_to_ptr.vmem [resolvable:$true] %s265
          %271 = dma.hbm_to_vmem [thread:$0]  %s8, 2048, %s266, [#allocation17], 128, 128, 8
        $region36: #{tpu_custom_call.1} parent=11 // pred_fallthru
          _
        // Predicated region
        $region37: #{tpu_custom_call.1} parent=11 // pred_check
          %p272 = pneg %p178
        $region38: #{tpu_custom_call.1} parent=11 // pred_check_branch
          %274 = sbr.rel (%p272) target = $region40
        $region39: #{tpu_custom_call.1} parent=11 // pred_region
          _
        $region40: #{tpu_custom_call.1} parent=11 // pred_fallthru
          _
      $region12: #{tpu_custom_call.1} parent=5 // pred_fallthru
        _
      %p275 = scmp.lt.s32.totalorder %s31, 8
      // Predicated region
      $region41: #{tpu_custom_call.1} parent=5 // pred_check
        %p276 = pneg %p275
      $region42: #{tpu_custom_call.1} parent=5 // pred_check_branch
        %278 = sbr.rel (%p276) target = $region44
      $region43: #{tpu_custom_call.1} parent=5 // pred_region
        _
      $region44: #{tpu_custom_call.1} parent=5 // pred_fallthru
        _
      %p279 = scmp.le.s32.totalorder 1, %s31
      %p280 = scmp.lt.s32.totalorder %s31, 9
      %p281 = pnand %p279, %p280
      %p282 = pneg %p281
      // Predicated region
      $region45: #{tpu_custom_call.1} parent=5 // pred_check
        _
      $region46: #{tpu_custom_call.1} parent=5 // pred_check_branch
        %284 = sbr.rel (%p281) target = $region48
      $region47: #{tpu_custom_call.1} parent=5 // pred_region
        %s285 = ssub.s32 %s31, 1
        // Predicated region
        $region49: #{tpu_custom_call.1} parent=47 // pred_check
          %p286 = pneg %p52
        $region50: #{tpu_custom_call.1} parent=47 // pred_check_branch
          %288 = sbr.rel (%p286) target = $region52
        $region51: #{tpu_custom_call.1} parent=47 // pred_region
          %289 = dma.done [#allocation11], 1024
        $region52: #{tpu_custom_call.1} parent=47 // pred_fallthru
          _
        // Predicated region
        $region53: #{tpu_custom_call.1} parent=47 // pred_check
          %p290 = pneg %p73
        $region54: #{tpu_custom_call.1} parent=47 // pred_check_branch
          %292 = sbr.rel (%p290) target = $region56
        $region55: #{tpu_custom_call.1} parent=47 // pred_region
          %293 = dma.done [#allocation14], 24576
        $region56: #{tpu_custom_call.1} parent=47 // pred_fallthru
          _
        // Predicated region
        $region57: #{tpu_custom_call.1} parent=47 // pred_check
          %p294 = pneg %p94
        $region58: #{tpu_custom_call.1} parent=47 // pred_check_branch
          %296 = sbr.rel (%p294) target = $region60
        $region59: #{tpu_custom_call.1} parent=47 // pred_region
          %297 = dma.done [#allocation14], 24576
        $region60: #{tpu_custom_call.1} parent=47 // pred_fallthru
          _
        // Predicated region
        $region61: #{tpu_custom_call.1} parent=47 // pred_check
          %p298 = pneg %p157
        $region62: #{tpu_custom_call.1} parent=47 // pred_check_branch
          %300 = sbr.rel (%p298) target = $region64
        $region63: #{tpu_custom_call.1} parent=47 // pred_region
          %301 = dma.done [#allocation17], 2048
        $region64: #{tpu_custom_call.1} parent=47 // pred_fallthru
          _
        %p302 = pneg %p52
        %p303 = pneg %p49
        %p304 = pneg %p73
        %p305 = pneg %p70
        %p306 = pneg %p94
        %p307 = pneg %p91
        %p308 = pneg %p115
        %p309 = pneg %p112
        %p310 = pneg %p136
        %p311 = pneg %p133
        %p312 = pneg %p157
        %p313 = pneg %p154
        %p314 = pneg %p178
        %p315 = pneg %p175
        %p316 = pneg %p199
        %p317 = pneg %p196
        %p318 = scmp.eq.s32.totalorder %s36, 7
        %p319 = scmp.eq.s32.totalorder %s36, 0
        // Predicated region
        $region65: #{tpu_custom_call.1} parent=47 // pred_check
          %p320 = pneg %p319
        $region66: #{tpu_custom_call.1} parent=47 // pred_check_branch
          %322 = sbr.rel (%p320) target = $region68
        $region67: #{tpu_custom_call.1} parent=47 // pred_region
          %323 = vst [vmem:[#allocation2] sm:$0x1] 0.0
          %324 = vst [vmem:[#allocation3] sm:$0xff] 0.0
          %325 = vst [vmem:[#allocation5] sm:$0xff] 0.0
        $region68: #{tpu_custom_call.1} parent=47 // pred_fallthru
          _
        // Predicated region
        $region69: #{tpu_custom_call.1} parent=47 // pred_check
          %p326 = pneg %p318
        $region70: #{tpu_custom_call.1} parent=47 // pred_check_branch
          %328 = sbr.rel (%p326) target = $region72
        $region71: #{tpu_custom_call.1} parent=47 // pred_region
          %v329 = vlaneseq
          %v330 = vshrl.u32 %v329, 7
          %vm331 = vcmp.lt.s32.totalorder %v330, 3
          %v332 = vld [vmem:[#allocation3] sm:$0xff]
          %v333 = vsel %vm331, %v332, 0.0
          %v334 = vrot.slane %v333, 4
          %v335 = vadd.f32 %v333, %v334
          %v336 = vrot.slane %v335, 2
          %v337 = vadd.f32 %v335, %v336
          %v338 = vrot.slane %v337, 1
          %v339 = vadd.f32 %v337, %v338
          %s340 = sld [smem:[#allocation9]]
          %p341 = scmp.gt.s32.totalorder %s340, 1
          %s342 = scalar_select %p341, %s340, 1
          %s343 = scvt.s32.f32 %s342
          %v344 = vstv %s343
          %v345 = vrcp.pop %v344
          %s346 = vtos %v345
          %v347 = vstv %s346
          %v348 = vmul.f32 %v339, %v347
          %349 = vst [vmem:[#allocation2] sm:$0x1] %v348
        $region72: #{tpu_custom_call.1} parent=47 // pred_fallthru
          _
        %s350 = sld [smem:[#allocation8 + %s36]]
        %s351 = sld [smem:[#allocation7 + %s36]]
        %s352 = smul.u32 %s36, 8
        %s353 = scalar_lea.vmem [#allocation10], %s352
        %v354 = vld [vmem:[%s353] sm:$0xff]
        %s355 = smul.u32 %s350, 48
        %s356 = smul.addr %s355, 8
        %s357 = scalar_lea.vmem [#allocation13], %s356
        %v358 = vld [vmem:[%s357] sm:$0xff]
        %v359 = vld [vmem:[%s357 + $0x8] sm:$0xff]
        %v360 = vld [vmem:[%s357 + $0x10] sm:$0xff]
        %v361 = vld [vmem:[%s357 + $0x18] sm:$0xff]
        %v362 = vld [vmem:[%s357 + $0x20] sm:$0xff]
        %v363 = vld [vmem:[%s357 + $0x28] sm:$0xff]
        %v364 = vld [vmem:[%s357 + $0x30] sm:$0xff]
        %v365 = vld [vmem:[%s357 + $0x38] sm:$0xff]
        %v366 = vld [vmem:[%s357 + $0x40] sm:$0xff]
        %v367 = vld [vmem:[%s357 + $0x48] sm:$0xff]
        %v368 = vld [vmem:[%s357 + $0x50] sm:$0xff]
        %v369 = vld [vmem:[%s357 + $0x58] sm:$0xff]
        %v370 = vld [vmem:[%s357 + $0x60] sm:$0xff]
        %v371 = vld [vmem:[%s357 + $0x68] sm:$0xff]
        %v372 = vld [vmem:[%s357 + $0x70] sm:$0xff]
        %v373 = vld [vmem:[%s357 + $0x78] sm:$0xff]
        %v374 = vld [vmem:[%s357 + $0x80] sm:$0xff]
        %v375 = vld [vmem:[%s357 + $0x88] sm:$0xff]
        %v376 = vld [vmem:[%s357 + $0x90] sm:$0xff]
        %v377 = vld [vmem:[%s357 + $0x98] sm:$0xff]
        %v378 = vld [vmem:[%s357 + $0xa0] sm:$0xff]
        %v379 = vld [vmem:[%s357 + $0xa8] sm:$0xff]
        %v380 = vld [vmem:[%s357 + $0xb0] sm:$0xff]
        %v381 = vld [vmem:[%s357 + $0xb8] sm:$0xff]
        %v382 = vld [vmem:[%s357 + $0xc0] sm:$0xff]
        %v383 = vld [vmem:[%s357 + $0xc8] sm:$0xff]
        %v384 = vld [vmem:[%s357 + $0xd0] sm:$0xff]
        %v385 = vld [vmem:[%s357 + $0xd8] sm:$0xff]
        %v386 = vld [vmem:[%s357 + $0xe0] sm:$0xff]
        %v387 = vld [vmem:[%s357 + $0xe8] sm:$0xff]
        %v388 = vld [vmem:[%s357 + $0xf0] sm:$0xff]
        %v389 = vld [vmem:[%s357 + $0xf8] sm:$0xff]
        %v390 = vld [vmem:[%s357 + $0x100] sm:$0xff]
        %v391 = vld [vmem:[%s357 + $0x108] sm:$0xff]
        %v392 = vld [vmem:[%s357 + $0x110] sm:$0xff]
        %v393 = vld [vmem:[%s357 + $0x118] sm:$0xff]
        %v394 = vld [vmem:[%s357 + $0x120] sm:$0xff]
        %v395 = vld [vmem:[%s357 + $0x128] sm:$0xff]
        %v396 = vld [vmem:[%s357 + $0x130] sm:$0xff]
        %v397 = vld [vmem:[%s357 + $0x138] sm:$0xff]
        %v398 = vld [vmem:[%s357 + $0x140] sm:$0xff]
        %v399 = vld [vmem:[%s357 + $0x148] sm:$0xff]
        %v400 = vld [vmem:[%s357 + $0x150] sm:$0xff]
        %v401 = vld [vmem:[%s357 + $0x158] sm:$0xff]
        %v402 = vld [vmem:[%s357 + $0x160] sm:$0xff]
        %v403 = vld [vmem:[%s357 + $0x168] sm:$0xff]
        %v404 = vld [vmem:[%s357 + $0x170] sm:$0xff]
        %v405 = vld [vmem:[%s357 + $0x178] sm:$0xff]
        %s406 = smul.u32 %s350, 3
        %s407 = scalar_lea.vmem %s6, %s406
        %v408 = vld [vmem:[%s407] sm:$0x7]
        %v410 = vlaneseq
        %v411 = vshrl.u32 %v410, 7
        %v412 = vsub.s32 0, %v411
        %v413 = vrot.slane %v408, %v412
        %v414 = vlaneseq
        %v415 = vshrl.u32 %v414, 7
        %v416 = vsub.s32 1, %v415
        %v417 = vrot.slane %v408, %v416
        %v418 = vlaneseq
        %v419 = vshrl.u32 %v418, 7
        %v420 = vsub.s32 2, %v419
        %v421 = vrot.slane %v408, %v420
        %425 = vmatprep.subr.mxu0 %v359
        %426 = vmatpush1.msra.mxu0 %v358
        %427 = vmatprep.subr.mxu0 %v362
        %428 = vmatpush1.msra.mxu0 %v361
        %429 = vmatprep.subr.mxu0 %v365
        %430 = vmatpush1.msra.mxu0 %v364
        %431 = vmatprep.subr.mxu0 %v368
        %432 = vmatpush1.msra.mxu0 %v367
        %433 = vmatprep.subr.mxu0 %v371
        %434 = vmatpush1.msra.mxu0 %v370
        %435 = vmatprep.subr.mxu0 %v374
        %436 = vmatpush1.msra.mxu0 %v373
        %437 = vmatprep.subr.mxu0 %v377
        %438 = vmatpush1.msra.mxu0 %v376
        %439 = vmatprep.subr.mxu0 %v380
        %440 = vmatpush1.msra.mxu0 %v379
        %441 = vmatprep.subr.mxu0 %v383
        %442 = vmatpush1.msra.mxu0 %v382
        %443 = vmatprep.subr.mxu0 %v386
        %444 = vmatpush1.msra.mxu0 %v385
        %445 = vmatprep.subr.mxu0 %v389
        %446 = vmatpush1.msra.mxu0 %v388
        %447 = vmatprep.subr.mxu0 %v392
        %448 = vmatpush1.msra.mxu0 %v391
        %449 = vmatprep.subr.mxu0 %v395
        %450 = vmatpush1.msra.mxu0 %v394
        %451 = vmatprep.subr.mxu0 %v398
        %452 = vmatpush1.msra.mxu0 %v397
        %453 = vmatprep.subr.mxu0 %v401
        %454 = vmatpush1.msra.mxu0 %v400
        %455 = vmatprep.subr.mxu0 %v404
        %456 = vmatpush1.msra.mxu0 %v403
        %457 = vmatprep.subr.mxu0 0.0
        %458 = vmatpush1.msra.mxu0 0.0
        %459 = vmatprep.subr.mxu0 0.0
        %460 = vmatpush1.msra.mxu0 0.0
        %461 = vmatprep.subr.mxu0 0.0
        %462 = vmatpush1.msra.mxu0 0.0
        %463 = vmatprep.subr.mxu0 0.0
        %464 = vmatpush1.msra.mxu0 0.0
        %465 = vmatprep.subr.mxu0 0.0
        %466 = vmatpush1.msra.mxu0 0.0
        %467 = vmatprep.subr.mxu0 0.0
        %468 = vmatpush1.msra.mxu0 0.0
        %469 = vmatprep.subr.mxu0 0.0
        %470 = vmatpush1.msra.mxu0 0.0
        %471 = vmatprep.subr.mxu0 0.0
        %472 = vmatpush1.msra.mxu0 0.0
        %473 = vmatprep.subr.mxu0 0.0
        %474 = vmatpush1.msra.mxu0 0.0
        %475 = vmatprep.subr.mxu0 0.0
        %476 = vmatpush1.msra.mxu0 0.0
        %477 = vmatprep.subr.mxu0 0.0
        %478 = vmatpush1.msra.mxu0 0.0
        %479 = vmatprep.subr.mxu0 0.0
        %480 = vmatpush1.msra.mxu0 0.0
        %481 = vmatprep.subr.mxu0 0.0
        %482 = vmatpush1.msra.mxu0 0.0
        %483 = vmatprep.subr.mxu0 0.0
        %484 = vmatpush1.msra.mxu0 0.0
        %485 = vmatprep.subr.mxu0 0.0
        %486 = vmatpush1.msra.mxu0 0.0
        %487 = vmatprep.subr.mxu0 0.0
        %488 = vmatpush1.msra.mxu0 0.0
        %489 = vmatprep.mubr.f32.mxu0 0.0
        %490 = vmatmul.mubr.f32.gmra.mrb[0].mxu0 %v354
        %v491 = vpop.f32.mrb[0].mxu0
        %v492 = vadd.f32 %v413, %v491
        %v493 = vpop.f32.mrb[0].mxu0
        %v494 = vadd.f32 %v417, %v493
        %495 = vdwg.mxu0
        %496 = vmatprep.subr.mxu0 0.0
        %497 = vmatpush1.msra.mxu0 %v360
        %498 = vmatprep.subr.mxu0 0.0
        %499 = vmatpush1.msra.mxu0 %v363
        %500 = vmatprep.subr.mxu0 0.0
        %501 = vmatpush1.msra.mxu0 %v366
        %502 = vmatprep.subr.mxu0 0.0
        %503 = vmatpush1.msra.mxu0 %v369
        %504 = vmatprep.subr.mxu0 0.0
        %505 = vmatpush1.msra.mxu0 %v372
        %506 = vmatprep.subr.mxu0 0.0
        %507 = vmatpush1.msra.mxu0 %v375
        %508 = vmatprep.subr.mxu0 0.0
        %509 = vmatpush1.msra.mxu0 %v378
        %510 = vmatprep.subr.mxu0 0.0
        %511 = vmatpush1.msra.mxu0 %v381
        %512 = vmatprep.subr.mxu0 0.0
        %513 = vmatpush1.msra.mxu0 %v384
        %514 = vmatprep.subr.mxu0 0.0
        %515 = vmatpush1.msra.mxu0 %v387
        %516 = vmatprep.subr.mxu0 0.0
        %517 = vmatpush1.msra.mxu0 %v390
        %518 = vmatprep.subr.mxu0 0.0
        %519 = vmatpush1.msra.mxu0 %v393
        %520 = vmatprep.subr.mxu0 0.0
        %521 = vmatpush1.msra.mxu0 %v396
        %522 = vmatprep.subr.mxu0 0.0
        %523 = vmatpush1.msra.mxu0 %v399
        %524 = vmatprep.subr.mxu0 0.0
        %525 = vmatpush1.msra.mxu0 %v402
        %526 = vmatprep.subr.mxu0 0.0
        %527 = vmatpush1.msra.mxu0 %v405
        %528 = vmatprep.subr.mxu0 0.0
        %529 = vmatpush1.msra.mxu0 0.0
        %530 = vmatprep.subr.mxu0 0.0
        %531 = vmatpush1.msra.mxu0 0.0
        %532 = vmatprep.subr.mxu0 0.0
        %533 = vmatpush1.msra.mxu0 0.0
        %534 = vmatprep.subr.mxu0 0.0
        %535 = vmatpush1.msra.mxu0 0.0
        %536 = vmatprep.subr.mxu0 0.0
        %537 = vmatpush1.msra.mxu0 0.0
        %538 = vmatprep.subr.mxu0 0.0
        %539 = vmatpush1.msra.mxu0 0.0
        %540 = vmatprep.subr.mxu0 0.0
        %541 = vmatpush1.msra.mxu0 0.0
        %542 = vmatprep.subr.mxu0 0.0
        %543 = vmatpush1.msra.mxu0 0.0
        %544 = vmatprep.subr.mxu0 0.0
        %545 = vmatpush1.msra.mxu0 0.0
        %546 = vmatprep.subr.mxu0 0.0
        %547 = vmatpush1.msra.mxu0 0.0
        %548 = vmatprep.subr.mxu0 0.0
        %549 = vmatpush1.msra.mxu0 0.0
        %550 = vmatprep.subr.mxu0 0.0
        %551 = vmatpush1.msra.mxu0 0.0
        %552 = vmatprep.subr.mxu0 0.0
        %553 = vmatpush1.msra.mxu0 0.0
        %554 = vmatprep.subr.mxu0 0.0
        %555 = vmatpush1.msra.mxu0 0.0
        %556 = vmatprep.subr.mxu0 0.0
        %557 = vmatpush1.msra.mxu0 0.0
        %558 = vmatprep.subr.mxu0 0.0
        %559 = vmatpush1.msra.mxu0 0.0
        %560 = vmatprep.mubr.f32.mxu0 0.0
        %561 = vmatmul.mubr.f32.gmra.mrb[0].mxu0 %v354
        %v562 = vpop.f32.mrb[0].mxu0
        %v563 = vadd.f32 %v421, %v562
        %v564 = vpop.f32.mrb[0].mxu0
        %565 = vdwg.mxu0
        %566 = vst [vmem:[#allocation4] sm:$0xff] %v492
        %567 = vst [vmem:[#allocation4 + $0x8] sm:$0xff] %v494
        %568 = vst [vmem:[#allocation4 + $0x10] sm:$0xff] %v563
        %p569 = scmp.ne.s32.totalorder %s36, 7
        // Predicated region
        $region73: #{tpu_custom_call.1} parent=47 // pred_check
          %p570 = pneg %p569
        $region74: #{tpu_custom_call.1} parent=47 // pred_check_branch
          %572 = sbr.rel (%p570) target = $region76
        $region75: #{tpu_custom_call.1} parent=47 // pred_region
          %v573 = vld [vmem:[#allocation2] sm:$0x1]
          // While loop
          $region77: #{tpu_custom_call.1} parent=75 // loop_pre_header
            _
          $region78: #{tpu_custom_call.1} parent=75 // loop_header
            %s575 = sphi 0, %s577
            %p576 = scmp.ge.s32.totalorder %s575, %s351
            %v580 = vphi %v573, %v824
          $region79: #{tpu_custom_call.1} parent=75 // loop_header_branch
            %579 = sbr.rel (%p576) target = $region83
          $region80: #{tpu_custom_call.1} parent=75 // loop_body
            %s581 = sshra.s32 %s575, 3
            %s582 = sand.u32 %s575, 7
            %s583 = sshra.s32 %s575, 3
            %s584 = sand.u32 %s575, 7
            %s585 = smul.u32 %s581, 3
            %s586 = smul.u32 %s585, 8
            %s587 = sadd.s32 %s586, %s584
            %s588 = scalar_lea.vmem [#allocation4], %s587
            %v589 = vld [vmem:[%s588] ss:$8 sm:$0x7]
            %s590 = smul.addr %s355, 8
            %s591 = scalar_lea.vmem [#allocation15], %s590
            %v592 = vld [vmem:[%s591] sm:$0xff]
            %v593 = vld [vmem:[%s591 + $0x8] sm:$0xff]
            %v594 = vld [vmem:[%s591 + $0x10] sm:$0xff]
            %v595 = vld [vmem:[%s591 + $0x18] sm:$0xff]
            %v596 = vld [vmem:[%s591 + $0x20] sm:$0xff]
            %v597 = vld [vmem:[%s591 + $0x28] sm:$0xff]
            %v598 = vld [vmem:[%s591 + $0x30] sm:$0xff]
            %v599 = vld [vmem:[%s591 + $0x38] sm:$0xff]
            %v600 = vld [vmem:[%s591 + $0x40] sm:$0xff]
            %v601 = vld [vmem:[%s591 + $0x48] sm:$0xff]
            %v602 = vld [vmem:[%s591 + $0x50] sm:$0xff]
            %v603 = vld [vmem:[%s591 + $0x58] sm:$0xff]
            %v604 = vld [vmem:[%s591 + $0x60] sm:$0xff]
            %v605 = vld [vmem:[%s591 + $0x68] sm:$0xff]
            %v606 = vld [vmem:[%s591 + $0x70] sm:$0xff]
            %v607 = vld [vmem:[%s591 + $0x78] sm:$0xff]
            %v608 = vld [vmem:[%s591 + $0x80] sm:$0xff]
            %v609 = vld [vmem:[%s591 + $0x88] sm:$0xff]
            %v610 = vld [vmem:[%s591 + $0x90] sm:$0xff]
            %v611 = vld [vmem:[%s591 + $0x98] sm:$0xff]
            %v612 = vld [vmem:[%s591 + $0xa0] sm:$0xff]
            %v613 = vld [vmem:[%s591 + $0xa8] sm:$0xff]
            %v614 = vld [vmem:[%s591 + $0xb0] sm:$0xff]
            %v615 = vld [vmem:[%s591 + $0xb8] sm:$0xff]
            %v616 = vld [vmem:[%s591 + $0xc0] sm:$0xff]
            %v617 = vld [vmem:[%s591 + $0xc8] sm:$0xff]
            %v618 = vld [vmem:[%s591 + $0xd0] sm:$0xff]
            %v619 = vld [vmem:[%s591 + $0xd8] sm:$0xff]
            %v620 = vld [vmem:[%s591 + $0xe0] sm:$0xff]
            %v621 = vld [vmem:[%s591 + $0xe8] sm:$0xff]
            %v622 = vld [vmem:[%s591 + $0xf0] sm:$0xff]
            %v623 = vld [vmem:[%s591 + $0xf8] sm:$0xff]
            %v624 = vld [vmem:[%s591 + $0x100] sm:$0xff]
            %v625 = vld [vmem:[%s591 + $0x108] sm:$0xff]
            %v626 = vld [vmem:[%s591 + $0x110] sm:$0xff]
            %v627 = vld [vmem:[%s591 + $0x118] sm:$0xff]
            %v628 = vld [vmem:[%s591 + $0x120] sm:$0xff]
            %v629 = vld [vmem:[%s591 + $0x128] sm:$0xff]
            %v630 = vld [vmem:[%s591 + $0x130] sm:$0xff]
            %v631 = vld [vmem:[%s591 + $0x138] sm:$0xff]
            %v632 = vld [vmem:[%s591 + $0x140] sm:$0xff]
            %v633 = vld [vmem:[%s591 + $0x148] sm:$0xff]
            %v634 = vld [vmem:[%s591 + $0x150] sm:$0xff]
            %v635 = vld [vmem:[%s591 + $0x158] sm:$0xff]
            %v636 = vld [vmem:[%s591 + $0x160] sm:$0xff]
            %v637 = vld [vmem:[%s591 + $0x168] sm:$0xff]
            %v638 = vld [vmem:[%s591 + $0x170] sm:$0xff]
            %v639 = vld [vmem:[%s591 + $0x178] sm:$0xff]
            %s640 = scalar_lea.vmem %s7, %s406
            %v641 = vld [vmem:[%s640] sm:$0x7]
            %v643 = vlaneseq
            %v644 = vshrl.u32 %v643, 7
            %v645 = vsub.s32 0, %v644
            %v646 = vrot.slane %v641, %v645
            %v647 = vlaneseq
            %v648 = vshrl.u32 %v647, 7
            %v649 = vsub.s32 1, %v648
            %v650 = vrot.slane %v641, %v649
            %v651 = vlaneseq
            %v652 = vshrl.u32 %v651, 7
            %v653 = vsub.s32 2, %v652
            %v654 = vrot.slane %v641, %v653
            %658 = vmatprep.subr.mxu0 %v593
            %659 = vmatpush1.msra.mxu0 %v592
            %660 = vmatprep.subr.mxu0 %v596
            %661 = vmatpush1.msra.mxu0 %v595
            %662 = vmatprep.subr.mxu0 %v599
            %663 = vmatpush1.msra.mxu0 %v598
            %664 = vmatprep.subr.mxu0 %v602
            %665 = vmatpush1.msra.mxu0 %v601
            %666 = vmatprep.subr.mxu0 %v605
            %667 = vmatpush1.msra.mxu0 %v604
            %668 = vmatprep.subr.mxu0 %v608
            %669 = vmatpush1.msra.mxu0 %v607
            %670 = vmatprep.subr.mxu0 %v611
            %671 = vmatpush1.msra.mxu0 %v610
            %672 = vmatprep.subr.mxu0 %v614
            %673 = vmatpush1.msra.mxu0 %v613
            %674 = vmatprep.subr.mxu0 %v617
            %675 = vmatpush1.msra.mxu0 %v616
            %676 = vmatprep.subr.mxu0 %v620
            %677 = vmatpush1.msra.mxu0 %v619
            %678 = vmatprep.subr.mxu0 %v623
            %679 = vmatpush1.msra.mxu0 %v622
            %680 = vmatprep.subr.mxu0 %v626
            %681 = vmatpush1.msra.mxu0 %v625
            %682 = vmatprep.subr.mxu0 %v629
            %683 = vmatpush1.msra.mxu0 %v628
            %684 = vmatprep.subr.mxu0 %v632
            %685 = vmatpush1.msra.mxu0 %v631
            %686 = vmatprep.subr.mxu0 %v635
            %687 = vmatpush1.msra.mxu0 %v634
            %688 = vmatprep.subr.mxu0 %v638
            %689 = vmatpush1.msra.mxu0 %v637
            %690 = vmatprep.subr.mxu0 0.0
            %691 = vmatpush1.msra.mxu0 0.0
            %692 = vmatprep.subr.mxu0 0.0
            %693 = vmatpush1.msra.mxu0 0.0
            %694 = vmatprep.subr.mxu0 0.0
            %695 = vmatpush1.msra.mxu0 0.0
            %696 = vmatprep.subr.mxu0 0.0
            %697 = vmatpush1.msra.mxu0 0.0
            %698 = vmatprep.subr.mxu0 0.0
            %699 = vmatpush1.msra.mxu0 0.0
            %700 = vmatprep.subr.mxu0 0.0
            %701 = vmatpush1.msra.mxu0 0.0
            %702 = vmatprep.subr.mxu0 0.0
            %703 = vmatpush1.msra.mxu0 0.0
            %704 = vmatprep.subr.mxu0 0.0
            %705 = vmatpush1.msra.mxu0 0.0
            %706 = vmatprep.subr.mxu0 0.0
            %707 = vmatpush1.msra.mxu0 0.0
            %708 = vmatprep.subr.mxu0 0.0
            %709 = vmatpush1.msra.mxu0 0.0
            %710 = vmatprep.subr.mxu0 0.0
            %711 = vmatpush1.msra.mxu0 0.0
            %712 = vmatprep.subr.mxu0 0.0
            %713 = vmatpush1.msra.mxu0 0.0
            %714 = vmatprep.subr.mxu0 0.0
            %715 = vmatpush1.msra.mxu0 0.0
            %716 = vmatprep.subr.mxu0 0.0
            %717 = vmatpush1.msra.mxu0 0.0
            %718 = vmatprep.subr.mxu0 0.0
            %719 = vmatpush1.msra.mxu0 0.0
            %720 = vmatprep.subr.mxu0 0.0
            %721 = vmatpush1.msra.mxu0 0.0
            %722 = vmatprep.mubr.f32.mxu0 0.0
            %723 = vmatmul.mubr.f32.gmra.mrb[0].mxu0 %v580
            %v724 = vpop.f32.mrb[0].mxu0
            %v725 = vadd.f32 %v646, %v724
            %v726 = vpop.f32.mrb[0].mxu0
            %v727 = vadd.f32 %v650, %v726
            %728 = vdwg.mxu0
            %729 = vmatprep.subr.mxu0 0.0
            %730 = vmatpush1.msra.mxu0 %v594
            %731 = vmatprep.subr.mxu0 0.0
            %732 = vmatpush1.msra.mxu0 %v597
            %733 = vmatprep.subr.mxu0 0.0
            %734 = vmatpush1.msra.mxu0 %v600
            %735 = vmatprep.subr.mxu0 0.0
            %736 = vmatpush1.msra.mxu0 %v603
            %737 = vmatprep.subr.mxu0 0.0
            %738 = vmatpush1.msra.mxu0 %v606
            %739 = vmatprep.subr.mxu0 0.0
            %740 = vmatpush1.msra.mxu0 %v609
            %741 = vmatprep.subr.mxu0 0.0
            %742 = vmatpush1.msra.mxu0 %v612
            %743 = vmatprep.subr.mxu0 0.0
            %744 = vmatpush1.msra.mxu0 %v615
            %745 = vmatprep.subr.mxu0 0.0
            %746 = vmatpush1.msra.mxu0 %v618
            %747 = vmatprep.subr.mxu0 0.0
            %748 = vmatpush1.msra.mxu0 %v621
            %749 = vmatprep.subr.mxu0 0.0
            %750 = vmatpush1.msra.mxu0 %v624
            %751 = vmatprep.subr.mxu0 0.0
            %752 = vmatpush1.msra.mxu0 %v627
            %753 = vmatprep.subr.mxu0 0.0
            %754 = vmatpush1.msra.mxu0 %v630
            %755 = vmatprep.subr.mxu0 0.0
            %756 = vmatpush1.msra.mxu0 %v633
            %757 = vmatprep.subr.mxu0 0.0
            %758 = vmatpush1.msra.mxu0 %v636
            %759 = vmatprep.subr.mxu0 0.0
            %760 = vmatpush1.msra.mxu0 %v639
            %761 = vmatprep.subr.mxu0 0.0
            %762 = vmatpush1.msra.mxu0 0.0
            %763 = vmatprep.subr.mxu0 0.0
            %764 = vmatpush1.msra.mxu0 0.0
            %765 = vmatprep.subr.mxu0 0.0
            %766 = vmatpush1.msra.mxu0 0.0
            %767 = vmatprep.subr.mxu0 0.0
            %768 = vmatpush1.msra.mxu0 0.0
            %769 = vmatprep.subr.mxu0 0.0
            %770 = vmatpush1.msra.mxu0 0.0
            %771 = vmatprep.subr.mxu0 0.0
            %772 = vmatpush1.msra.mxu0 0.0
            %773 = vmatprep.subr.mxu0 0.0
            %774 = vmatpush1.msra.mxu0 0.0
            %775 = vmatprep.subr.mxu0 0.0
            %776 = vmatpush1.msra.mxu0 0.0
            %777 = vmatprep.subr.mxu0 0.0
            %778 = vmatpush1.msra.mxu0 0.0
            %779 = vmatprep.subr.mxu0 0.0
            %780 = vmatpush1.msra.mxu0 0.0
            %781 = vmatprep.subr.mxu0 0.0
            %782 = vmatpush1.msra.mxu0 0.0
            %783 = vmatprep.subr.mxu0 0.0
            %784 = vmatpush1.msra.mxu0 0.0
            %785 = vmatprep.subr.mxu0 0.0
            %786 = vmatpush1.msra.mxu0 0.0
            %787 = vmatprep.subr.mxu0 0.0
            %788 = vmatpush1.msra.mxu0 0.0
            %789 = vmatprep.subr.mxu0 0.0
            %790 = vmatpush1.msra.mxu0 0.0
            %791 = vmatprep.subr.mxu0 0.0
            %792 = vmatpush1.msra.mxu0 0.0
            %793 = vmatprep.mubr.f32.mxu0 0.0
            %794 = vmatmul.mubr.f32.gmra.mrb[0].mxu0 %v580
            %v795 = vpop.f32.mrb[0].mxu0
            %v796 = vadd.f32 %v654, %v795
            %v797 = vpop.f32.mrb[0].mxu0
            %798 = vdwg.mxu0
            %v799 = vadd.f32 %v589, %v725
            %v800 = vxor.u32 %v799, 2147483648
            %v801 = vmul.f32 %v800, 1.442695
            %v802 = vpow.pop %v801
            %v803 = vadd.f32 %v802, 1.0
            %v804 = vrcp.pop %v803
            %v805 = vmul.f32 1.0, %v804
            %v807 = vrot.slane %v589, 1
            %v809 = vadd.f32 %v807, %v727
            %v810 = vxor.u32 %v809, 2147483648
            %v811 = vmul.f32 %v810, 1.442695
            %v812 = vpow.pop %v811
            %v813 = vadd.f32 %v812, 1.0
            %v814 = vrcp.pop %v813
            %v815 = vmul.f32 1.0, %v814
            %v816 = vmul.f32 %v805, %v796
            %v817 = vrot.slane %v589, 2
            %v819 = vadd.f32 %v817, %v816
            %v820 = vtanh.pop %v819
            %v821 = vsub.f32 1.0, %v815
            %v822 = vmul.f32 %v821, %v820
            %v823 = vmul.f32 %v815, %v580
            %v824 = vadd.f32 %v822, %v823
          $region81: #{tpu_custom_call.1} parent=75 // loop_footer
            %s577 = sadd.s32 %s575, 1
          $region82: #{tpu_custom_call.1} parent=75 // loop_footer_branch
            %574 = sbr.rel target = $region78
          $region83: #{tpu_custom_call.1} parent=75 // loop_exit
            _
          %825 = vst [vmem:[#allocation2] sm:$0x1] %v580
        $region76: #{tpu_custom_call.1} parent=47 // pred_fallthru
          _
        // Predicated region
        $region84: #{tpu_custom_call.1} parent=47 // pred_check
          %p826 = pneg %p318
        $region85: #{tpu_custom_call.1} parent=47 // pred_check_branch
          %828 = sbr.rel (%p826) target = $region87
        $region86: #{tpu_custom_call.1} parent=47 // pred_region
          %v829 = vld [vmem:[#allocation2] sm:$0x1]
          // While loop
          $region88: #{tpu_custom_call.1} parent=86 // loop_pre_header
            _
          $region89: #{tpu_custom_call.1} parent=86 // loop_header
            %s831 = sphi 0, %s833
            %p832 = scmp.ge.s32.totalorder %s831, %s351
            %v836 = vphi %v829, %v1080
          $region90: #{tpu_custom_call.1} parent=86 // loop_header_branch
            %835 = sbr.rel (%p832) target = $region94
          $region91: #{tpu_custom_call.1} parent=86 // loop_body
            %s837 = sshra.s32 %s831, 3
            %s838 = sand.u32 %s831, 7
            %s839 = sshra.s32 %s831, 3
            %s840 = sand.u32 %s831, 7
            %s841 = smul.u32 %s837, 3
            %s842 = smul.u32 %s841, 8
            %s843 = sadd.s32 %s842, %s840
            %s844 = scalar_lea.vmem [#allocation4], %s843
            %v845 = vld [vmem:[%s844] ss:$8 sm:$0x7]
            %s846 = smul.addr %s355, 8
            %s847 = scalar_lea.vmem [#allocation15], %s846
            %v848 = vld [vmem:[%s847] sm:$0xff]
            %v849 = vld [vmem:[%s847 + $0x8] sm:$0xff]
            %v850 = vld [vmem:[%s847 + $0x10] sm:$0xff]
            %v851 = vld [vmem:[%s847 + $0x18] sm:$0xff]
            %v852 = vld [vmem:[%s847 + $0x20] sm:$0xff]
            %v853 = vld [vmem:[%s847 + $0x28] sm:$0xff]
            %v854 = vld [vmem:[%s847 + $0x30] sm:$0xff]
            %v855 = vld [vmem:[%s847 + $0x38] sm:$0xff]
            %v856 = vld [vmem:[%s847 + $0x40] sm:$0xff]
            %v857 = vld [vmem:[%s847 + $0x48] sm:$0xff]
            %v858 = vld [vmem:[%s847 + $0x50] sm:$0xff]
            %v859 = vld [vmem:[%s847 + $0x58] sm:$0xff]
            %v860 = vld [vmem:[%s847 + $0x60] sm:$0xff]
            %v861 = vld [vmem:[%s847 + $0x68] sm:$0xff]
            %v862 = vld [vmem:[%s847 + $0x70] sm:$0xff]
            %v863 = vld [vmem:[%s847 + $0x78] sm:$0xff]
            %v864 = vld [vmem:[%s847 + $0x80] sm:$0xff]
            %v865 = vld [vmem:[%s847 + $0x88] sm:$0xff]
            %v866 = vld [vmem:[%s847 + $0x90] sm:$0xff]
            %v867 = vld [vmem:[%s847 + $0x98] sm:$0xff]
            %v868 = vld [vmem:[%s847 + $0xa0] sm:$0xff]
            %v869 = vld [vmem:[%s847 + $0xa8] sm:$0xff]
            %v870 = vld [vmem:[%s847 + $0xb0] sm:$0xff]
            %v871 = vld [vmem:[%s847 + $0xb8] sm:$0xff]
            %v872 = vld [vmem:[%s847 + $0xc0] sm:$0xff]
            %v873 = vld [vmem:[%s847 + $0xc8] sm:$0xff]
            %v874 = vld [vmem:[%s847 + $0xd0] sm:$0xff]
            %v875 = vld [vmem:[%s847 + $0xd8] sm:$0xff]
            %v876 = vld [vmem:[%s847 + $0xe0] sm:$0xff]
            %v877 = vld [vmem:[%s847 + $0xe8] sm:$0xff]
            %v878 = vld [vmem:[%s847 + $0xf0] sm:$0xff]
            %v879 = vld [vmem:[%s847 + $0xf8] sm:$0xff]
            %v880 = vld [vmem:[%s847 + $0x100] sm:$0xff]
            %v881 = vld [vmem:[%s847 + $0x108] sm:$0xff]
            %v882 = vld [vmem:[%s847 + $0x110] sm:$0xff]
            %v883 = vld [vmem:[%s847 + $0x118] sm:$0xff]
            %v884 = vld [vmem:[%s847 + $0x120] sm:$0xff]
            %v885 = vld [vmem:[%s847 + $0x128] sm:$0xff]
            %v886 = vld [vmem:[%s847 + $0x130] sm:$0xff]
            %v887 = vld [vmem:[%s847 + $0x138] sm:$0xff]
            %v888 = vld [vmem:[%s847 + $0x140] sm:$0xff]
            %v889 = vld [vmem:[%s847 + $0x148] sm:$0xff]
            %v890 = vld [vmem:[%s847 + $0x150] sm:$0xff]
            %v891 = vld [vmem:[%s847 + $0x158] sm:$0xff]
            %v892 = vld [vmem:[%s847 + $0x160] sm:$0xff]
            %v893 = vld [vmem:[%s847 + $0x168] sm:$0xff]
            %v894 = vld [vmem:[%s847 + $0x170] sm:$0xff]
            %v895 = vld [vmem:[%s847 + $0x178] sm:$0xff]
            %s896 = scalar_lea.vmem %s7, %s406
            %v897 = vld [vmem:[%s896] sm:$0x7]
            %v899 = vlaneseq
            %v900 = vshrl.u32 %v899, 7
            %v901 = vsub.s32 0, %v900
            %v902 = vrot.slane %v897, %v901
            %v903 = vlaneseq
            %v904 = vshrl.u32 %v903, 7
            %v905 = vsub.s32 1, %v904
            %v906 = vrot.slane %v897, %v905
            %v907 = vlaneseq
            %v908 = vshrl.u32 %v907, 7
            %v909 = vsub.s32 2, %v908
            %v910 = vrot.slane %v897, %v909
            %914 = vmatprep.subr.mxu0 %v849
            %915 = vmatpush1.msra.mxu0 %v848
            %916 = vmatprep.subr.mxu0 %v852
            %917 = vmatpush1.msra.mxu0 %v851
            %918 = vmatprep.subr.mxu0 %v855
            %919 = vmatpush1.msra.mxu0 %v854
            %920 = vmatprep.subr.mxu0 %v858
            %921 = vmatpush1.msra.mxu0 %v857
            %922 = vmatprep.subr.mxu0 %v861
            %923 = vmatpush1.msra.mxu0 %v860
            %924 = vmatprep.subr.mxu0 %v864
            %925 = vmatpush1.msra.mxu0 %v863
            %926 = vmatprep.subr.mxu0 %v867
            %927 = vmatpush1.msra.mxu0 %v866
            %928 = vmatprep.subr.mxu0 %v870
            %929 = vmatpush1.msra.mxu0 %v869
            %930 = vmatprep.subr.mxu0 %v873
            %931 = vmatpush1.msra.mxu0 %v872
            %932 = vmatprep.subr.mxu0 %v876
            %933 = vmatpush1.msra.mxu0 %v875
            %934 = vmatprep.subr.mxu0 %v879
            %935 = vmatpush1.msra.mxu0 %v878
            %936 = vmatprep.subr.mxu0 %v882
            %937 = vmatpush1.msra.mxu0 %v881
            %938 = vmatprep.subr.mxu0 %v885
            %939 = vmatpush1.msra.mxu0 %v884
            %940 = vmatprep.subr.mxu0 %v888
            %941 = vmatpush1.msra.mxu0 %v887
            %942 = vmatprep.subr.mxu0 %v891
            %943 = vmatpush1.msra.mxu0 %v890
            %944 = vmatprep.subr.mxu0 %v894
            %945 = vmatpush1.msra.mxu0 %v893
            %946 = vmatprep.subr.mxu0 0.0
            %947 = vmatpush1.msra.mxu0 0.0
            %948 = vmatprep.subr.mxu0 0.0
            %949 = vmatpush1.msra.mxu0 0.0
            %950 = vmatprep.subr.mxu0 0.0
            %951 = vmatpush1.msra.mxu0 0.0
            %952 = vmatprep.subr.mxu0 0.0
            %953 = vmatpush1.msra.mxu0 0.0
            %954 = vmatprep.subr.mxu0 0.0
            %955 = vmatpush1.msra.mxu0 0.0
            %956 = vmatprep.subr.mxu0 0.0
            %957 = vmatpush1.msra.mxu0 0.0
            %958 = vmatprep.subr.mxu0 0.0
            %959 = vmatpush1.msra.mxu0 0.0
            %960 = vmatprep.subr.mxu0 0.0
            %961 = vmatpush1.msra.mxu0 0.0
            %962 = vmatprep.subr.mxu0 0.0
            %963 = vmatpush1.msra.mxu0 0.0
            %964 = vmatprep.subr.mxu0 0.0
            %965 = vmatpush1.msra.mxu0 0.0
            %966 = vmatprep.subr.mxu0 0.0
            %967 = vmatpush1.msra.mxu0 0.0
            %968 = vmatprep.subr.mxu0 0.0
            %969 = vmatpush1.msra.mxu0 0.0
            %970 = vmatprep.subr.mxu0 0.0
            %971 = vmatpush1.msra.mxu0 0.0
            %972 = vmatprep.subr.mxu0 0.0
            %973 = vmatpush1.msra.mxu0 0.0
            %974 = vmatprep.subr.mxu0 0.0
            %975 = vmatpush1.msra.mxu0 0.0
            %976 = vmatprep.subr.mxu0 0.0
            %977 = vmatpush1.msra.mxu0 0.0
            %978 = vmatprep.mubr.f32.mxu0 0.0
            %979 = vmatmul.mubr.f32.gmra.mrb[0].mxu0 %v836
            %v980 = vpop.f32.mrb[0].mxu0
            %v981 = vadd.f32 %v902, %v980
            %v982 = vpop.f32.mrb[0].mxu0
            %v983 = vadd.f32 %v906, %v982
            %984 = vdwg.mxu0
            %985 = vmatprep.subr.mxu0 0.0
            %986 = vmatpush1.msra.mxu0 %v850
            %987 = vmatprep.subr.mxu0 0.0
            %988 = vmatpush1.msra.mxu0 %v853
            %989 = vmatprep.subr.mxu0 0.0
            %990 = vmatpush1.msra.mxu0 %v856
            %991 = vmatprep.subr.mxu0 0.0
            %992 = vmatpush1.msra.mxu0 %v859
            %993 = vmatprep.subr.mxu0 0.0
            %994 = vmatpush1.msra.mxu0 %v862
            %995 = vmatprep.subr.mxu0 0.0
            %996 = vmatpush1.msra.mxu0 %v865
            %997 = vmatprep.subr.mxu0 0.0
            %998 = vmatpush1.msra.mxu0 %v868
            %999 = vmatprep.subr.mxu0 0.0
            %1000 = vmatpush1.msra.mxu0 %v871
            %1001 = vmatprep.subr.mxu0 0.0
            %1002 = vmatpush1.msra.mxu0 %v874
            %1003 = vmatprep.subr.mxu0 0.0
            %1004 = vmatpush1.msra.mxu0 %v877
            %1005 = vmatprep.subr.mxu0 0.0
            %1006 = vmatpush1.msra.mxu0 %v880
            %1007 = vmatprep.subr.mxu0 0.0
            %1008 = vmatpush1.msra.mxu0 %v883
            %1009 = vmatprep.subr.mxu0 0.0
            %1010 = vmatpush1.msra.mxu0 %v886
            %1011 = vmatprep.subr.mxu0 0.0
            %1012 = vmatpush1.msra.mxu0 %v889
            %1013 = vmatprep.subr.mxu0 0.0
            %1014 = vmatpush1.msra.mxu0 %v892
            %1015 = vmatprep.subr.mxu0 0.0
            %1016 = vmatpush1.msra.mxu0 %v895
            %1017 = vmatprep.subr.mxu0 0.0
            %1018 = vmatpush1.msra.mxu0 0.0
            %1019 = vmatprep.subr.mxu0 0.0
            %1020 = vmatpush1.msra.mxu0 0.0
            %1021 = vmatprep.subr.mxu0 0.0
            %1022 = vmatpush1.msra.mxu0 0.0
            %1023 = vmatprep.subr.mxu0 0.0
            %1024 = vmatpush1.msra.mxu0 0.0
            %1025 = vmatprep.subr.mxu0 0.0
            %1026 = vmatpush1.msra.mxu0 0.0
            %1027 = vmatprep.subr.mxu0 0.0
            %1028 = vmatpush1.msra.mxu0 0.0
            %1029 = vmatprep.subr.mxu0 0.0
            %1030 = vmatpush1.msra.mxu0 0.0
            %1031 = vmatprep.subr.mxu0 0.0
            %1032 = vmatpush1.msra.mxu0 0.0
            %1033 = vmatprep.subr.mxu0 0.0
            %1034 = vmatpush1.msra.mxu0 0.0
            %1035 = vmatprep.subr.mxu0 0.0
            %1036 = vmatpush1.msra.mxu0 0.0
            %1037 = vmatprep.subr.mxu0 0.0
            %1038 = vmatpush1.msra.mxu0 0.0
            %1039 = vmatprep.subr.mxu0 0.0
            %1040 = vmatpush1.msra.mxu0 0.0
            %1041 = vmatprep.subr.mxu0 0.0
            %1042 = vmatpush1.msra.mxu0 0.0
            %1043 = vmatprep.subr.mxu0 0.0
            %1044 = vmatpush1.msra.mxu0 0.0
            %1045 = vmatprep.subr.mxu0 0.0
            %1046 = vmatpush1.msra.mxu0 0.0
            %1047 = vmatprep.subr.mxu0 0.0
            %1048 = vmatpush1.msra.mxu0 0.0
            %1049 = vmatprep.mubr.f32.mxu0 0.0
            %1050 = vmatmul.mubr.f32.gmra.mrb[0].mxu0 %v836
            %v1051 = vpop.f32.mrb[0].mxu0
            %v1052 = vadd.f32 %v910, %v1051
            %v1053 = vpop.f32.mrb[0].mxu0
            %1054 = vdwg.mxu0
            %v1055 = vadd.f32 %v845, %v981
            %v1056 = vxor.u32 %v1055, 2147483648
            %v1057 = vmul.f32 %v1056, 1.442695
            %v1058 = vpow.pop %v1057
            %v1059 = vadd.f32 %v1058, 1.0
            %v1060 = vrcp.pop %v1059
            %v1061 = vmul.f32 1.0, %v1060
            %v1063 = vrot.slane %v845, 1
            %v1065 = vadd.f32 %v1063, %v983
            %v1066 = vxor.u32 %v1065, 2147483648
            %v1067 = vmul.f32 %v1066, 1.442695
            %v1068 = vpow.pop %v1067
            %v1069 = vadd.f32 %v1068, 1.0
            %v1070 = vrcp.pop %v1069
            %v1071 = vmul.f32 1.0, %v1070
            %v1072 = vmul.f32 %v1061, %v1052
            %v1073 = vrot.slane %v845, 2
            %v1075 = vadd.f32 %v1073, %v1072
            %v1076 = vtanh.pop %v1075
            %v1077 = vsub.f32 1.0, %v1071
            %v1078 = vmul.f32 %v1077, %v1076
            %v1079 = vmul.f32 %v1071, %v836
            %v1080 = vadd.f32 %v1078, %v1079
            %s1081 = scalar_lea.vmem [#allocation5], %s831
            %1082 = vst [vmem:[%s1081] sm:$0x1] %v1080
          $region92: #{tpu_custom_call.1} parent=86 // loop_footer
            %s833 = sadd.s32 %s831, 1
          $region93: #{tpu_custom_call.1} parent=86 // loop_footer_branch
            %830 = sbr.rel target = $region89
          $region94: #{tpu_custom_call.1} parent=86 // loop_exit
            _
          %1083 = vst [vmem:[#allocation2] sm:$0x1] %v836
        $region87: #{tpu_custom_call.1} parent=47 // pred_fallthru
          _
        %v1084 = vlaneseq
        %v1085 = vshrl.u32 %v1084, 7
        %v1086 = vstv %s350
        %vm1087 = vcmp.eq.s32.totalorder %v1085, %v1086
        %v1088 = vld [vmem:[#allocation2] sm:$0x1]
        %v1089 = vld [vmem:[#allocation3] sm:$0xff]
        %v1090 = vsel %vm1087, 1, 0
        %vm1091 = vcmp.eq.s32.totalorder %v1090, 1
        %v1093 = vlaneseq
        %v1094 = vshrl.u32 %v1093, 7
        %v1095 = vsub.s32 0, %v1094
        %v1096 = vrot.slane %v1088, %v1095
        %v1098 = vsel %vm1091, %v1096, %v1089
        %1099 = vst [vmem:[#allocation3] sm:$0xff] %v1098
        // Predicated region
        $region95: #{tpu_custom_call.1} parent=47 // pred_check
          %p1100 = pneg %p318
        $region96: #{tpu_custom_call.1} parent=47 // pred_check_branch
          %1102 = sbr.rel (%p1100) target = $region98
        $region97: #{tpu_custom_call.1} parent=47 // pred_region
          %v1103 = vld [vmem:[#allocation5] sm:$0xff]
          %v1104 = vld [vmem:[#allocation16] sm:$0xff]
          %v1105 = vld [vmem:[#allocation16 + $0x8] sm:$0xff]
          %v1106 = vld [vmem:[#allocation16 + $0x10] sm:$0xff]
          %v1107 = vld [vmem:[#allocation16 + $0x18] sm:$0xff]
          %v1108 = vld [vmem:[#allocation16 + $0x20] sm:$0xff]
          %v1109 = vld [vmem:[#allocation16 + $0x28] sm:$0xff]
          %v1110 = vld [vmem:[#allocation16 + $0x30] sm:$0xff]
          %v1111 = vld [vmem:[#allocation16 + $0x38] sm:$0xff]
          %v1112 = vld [vmem:[#allocation16 + $0x40] sm:$0xff]
          %v1113 = vld [vmem:[#allocation16 + $0x48] sm:$0xff]
          %v1114 = vld [vmem:[#allocation16 + $0x50] sm:$0xff]
          %v1115 = vld [vmem:[#allocation16 + $0x58] sm:$0xff]
          %v1116 = vld [vmem:[#allocation16 + $0x60] sm:$0xff]
          %v1117 = vld [vmem:[#allocation16 + $0x68] sm:$0xff]
          %v1118 = vld [vmem:[#allocation16 + $0x70] sm:$0xff]
          %v1119 = vld [vmem:[#allocation16 + $0x78] sm:$0xff]
          %v1120 = vld [vmem:[%s9] sm:$0x1]
          %v1122 = vlaneseq
          %v1123 = vshrl.u32 %v1122, 7
          %v1124 = vsub.s32 0, %v1123
          %v1125 = vrot.slane %v1120, %v1124
          %1127 = vmatprep.subr.mxu0 0.0
          %1128 = vmatpush1.msra.mxu0 %v1104
          %1129 = vmatprep.subr.mxu0 0.0
          %1130 = vmatpush1.msra.mxu0 %v1105
          %1131 = vmatprep.subr.mxu0 0.0
          %1132 = vmatpush1.msra.mxu0 %v1106
          %1133 = vmatprep.subr.mxu0 0.0
          %1134 = vmatpush1.msra.mxu0 %v1107
          %1135 = vmatprep.subr.mxu0 0.0
          %1136 = vmatpush1.msra.mxu0 %v1108
          %1137 = vmatprep.subr.mxu0 0.0
          %1138 = vmatpush1.msra.mxu0 %v1109
          %1139 = vmatprep.subr.mxu0 0.0
          %1140 = vmatpush1.msra.mxu0 %v1110
          %1141 = vmatprep.subr.mxu0 0.0
          %1142 = vmatpush1.msra.mxu0 %v1111
          %1143 = vmatprep.subr.mxu0 0.0
          %1144 = vmatpush1.msra.mxu0 %v1112
          %1145 = vmatprep.subr.mxu0 0.0
          %1146 = vmatpush1.msra.mxu0 %v1113
          %1147 = vmatprep.subr.mxu0 0.0
          %1148 = vmatpush1.msra.mxu0 %v1114
          %1149 = vmatprep.subr.mxu0 0.0
          %1150 = vmatpush1.msra.mxu0 %v1115
          %1151 = vmatprep.subr.mxu0 0.0
          %1152 = vmatpush1.msra.mxu0 %v1116
          %1153 = vmatprep.subr.mxu0 0.0
          %1154 = vmatpush1.msra.mxu0 %v1117
          %1155 = vmatprep.subr.mxu0 0.0
          %1156 = vmatpush1.msra.mxu0 %v1118
          %1157 = vmatprep.subr.mxu0 0.0
          %1158 = vmatpush1.msra.mxu0 %v1119
          %1159 = vmatprep.subr.mxu0 0.0
          %1160 = vmatpush1.msra.mxu0 0.0
          %1161 = vmatprep.subr.mxu0 0.0
          %1162 = vmatpush1.msra.mxu0 0.0
          %1163 = vmatprep.subr.mxu0 0.0
          %1164 = vmatpush1.msra.mxu0 0.0
          %1165 = vmatprep.subr.mxu0 0.0
          %1166 = vmatpush1.msra.mxu0 0.0
          %1167 = vmatprep.subr.mxu0 0.0
          %1168 = vmatpush1.msra.mxu0 0.0
          %1169 = vmatprep.subr.mxu0 0.0
          %1170 = vmatpush1.msra.mxu0 0.0
          %1171 = vmatprep.subr.mxu0 0.0
          %1172 = vmatpush1.msra.mxu0 0.0
          %1173 = vmatprep.subr.mxu0 0.0
          %1174 = vmatpush1.msra.mxu0 0.0
          %1175 = vmatprep.subr.mxu0 0.0
          %1176 = vmatpush1.msra.mxu0 0.0
          %1177 = vmatprep.subr.mxu0 0.0
          %1178 = vmatpush1.msra.mxu0 0.0
          %1179 = vmatprep.subr.mxu0 0.0
          %1180 = vmatpush1.msra.mxu0 0.0
          %1181 = vmatprep.subr.mxu0 0.0
          %1182 = vmatpush1.msra.mxu0 0.0
          %1183 = vmatprep.subr.mxu0 0.0
          %1184 = vmatpush1.msra.mxu0 0.0
          %1185 = vmatprep.subr.mxu0 0.0
          %1186 = vmatpush1.msra.mxu0 0.0
          %1187 = vmatprep.subr.mxu0 0.0
          %1188 = vmatpush1.msra.mxu0 0.0
          %1189 = vmatprep.subr.mxu0 0.0
          %1190 = vmatpush1.msra.mxu0 0.0
          %1191 = vmatprep.mubr.f32.mxu0 0.0
          %1192 = vmatmul.mubr.f32.gmra.mrb[0].mxu0 %v1103
          %v1193 = vpop.f32.mrb[0].mxu0
          %v1194 = vadd.f32 %v1125, %v1193
          %v1195 = vpop.f32.mrb[0].mxu0
          %1196 = vdwg.mxu0
          %1197 = vst [vmem:[#allocation18] sm:$0xff] %v1194
        $region98: #{tpu_custom_call.1} parent=47 // pred_fallthru
          _
        // Predicated region
        $region99: #{tpu_custom_call.1} parent=47 // pred_check
          %p1198 = pneg %p196
        $region100: #{tpu_custom_call.1} parent=47 // pred_check_branch
          %1200 = sbr.rel (%p1198) target = $region102
        $region101: #{tpu_custom_call.1} parent=47 // pred_region
          %s1202 = ssub.s32 128, 128
          %1203 = vsyncadd [#allocation12], %s1202
          %s1205 = sshll.u32 [#allocation18], 4
          %s1206 = int_to_ptr.vmem [resolvable:$true] %s1205
          %1208 = dma.vmem_to_hbm [thread:$0]  %s1206, 128, %s10, [#allocation12]
        $region102: #{tpu_custom_call.1} parent=47 // pred_fallthru
          _
        // Predicated region
        $region103: #{tpu_custom_call.1} parent=47 // pred_check
          %p1209 = pneg %p196
        $region104: #{tpu_custom_call.1} parent=47 // pred_check_branch
          %1211 = sbr.rel (%p1209) target = $region106
        $region105: #{tpu_custom_call.1} parent=47 // pred_region
          %1212 = dma.done [#allocation12], 128
        $region106: #{tpu_custom_call.1} parent=47 // pred_fallthru
          _
      $region48: #{tpu_custom_call.1} parent=5 // pred_fallthru
        _
      %p1213 = scmp.le.s32.totalorder 2, %s31
      // Predicated region
      $region107: #{tpu_custom_call.1} parent=5 // pred_check
        %p1214 = pneg %p1213
      $region108: #{tpu_custom_call.1} parent=5 // pred_check_branch
        %1216 = sbr.rel (%p1214) target = $region110
      $region109: #{tpu_custom_call.1} parent=5 // pred_region
        %s1217 = ssub.s32 %s31, 2
      $region110: #{tpu_custom_call.1} parent=5 // pred_fallthru
        _
    $region6: #{tpu_custom_call.1} parent=1 // loop_footer
      %s35 = sadd.s32 1, %s31
    $region7: #{tpu_custom_call.1} parent=1 // loop_footer_branch
      %30 = sbr.rel target = $region3
    $region8: #{tpu_custom_call.1} parent=1 // loop_exit
      _
    %1218 = vsyncpa [#allocation11], 1
    %s1219 = scalar_lea.sflag [#allocation11], 1
    %1220 = vsyncpa %s1219, 1
    %1221 = vsyncpa [#allocation14], 1
    %1222 = vsyncpa [#allocation17], 1
    %1223 = vsyncpa [#allocation12], 1
    %s1224 = scalar_lea.sflag [#allocation12], 1
    %1225 = vsyncpa %s1224, 1

</llo_original>
